<compile_context>
chip_gen: v7x
topology: tpu7x:2x2x1
jax: 0.10.0
libtpu: 0.0.40
codegen_flags: <defaults>
</compile_context>

<pallas_src>
import math
from functools import partial

import jax
import jax.numpy as jnp
from jax.experimental import pallas as pl
from jax.experimental.pallas import tpu as pltpu


def _layernorm(x, gamma, beta, eps=1e-5):
    mu = jnp.mean(x, axis=-1, keepdims=True)
    var = jnp.mean((x - mu) ** 2, axis=-1, keepdims=True)
    return (x - mu) * jax.lax.rsqrt(var + eps) * gamma + beta


def _gelu_exact(x):
    # matches torch.nn.GELU() default (erf formulation)
    return 0.5 * x * (1.0 + jax.lax.erf(x * (1.0 / math.sqrt(2.0))))


def block_kernel(x_ref,
                 ln1_g_ref, ln1_b_ref,
                 wqkv_ref,                 # (C, 3C)   bf16, scale folded into Q cols
                 wproj_ref, bproj_ref,     # (H, hd, C) bf16, (1, C) f32
                 ln2_g_ref, ln2_b_ref,
                 w1_ref, b1_ref,           # (C, Hd) bf16, (1, Hd) f32
                 w2_ref, b2_ref,           # (Hd, C) bf16, (1, C) f32
                 o_ref,
                 *, num_heads, head_dim, compute_dtype):
    H, hd = num_heads, head_dim
    C = H * hd
    N = x_ref.shape[1]
    cdt = compute_dtype

    x = x_ref[0].astype(jnp.float32)                              # (N, C)

    # ---------------- attention branch ----------------
    h = _layernorm(x, ln1_g_ref[0], ln1_b_ref[0])                 # f32 (N, C)
    qkv = jnp.dot(h.astype(cdt), wqkv_ref[...],
                  preferred_element_type=jnp.float32)             # (N, 3C) f32

    def heads(m):                                                 # (N, C) -> (H, N, hd)
        return m.reshape(N, H, hd).transpose(1, 0, 2)

    q = heads(qkv[:, 0 * C:1 * C]).astype(cdt)                    # scale pre-folded
    k = heads(qkv[:, 1 * C:2 * C]).astype(cdt)
    v = heads(qkv[:, 2 * C:3 * C]).astype(cdt)

    # head-batched QK^T  -> (H, N, N), f32 accumulation
    s = jnp.einsum('hnd,hmd->hnm', q, k, preferred_element_type=jnp.float32)
    s = s - jnp.max(s, axis=-1, keepdims=True)
    p = jnp.exp(s)
    p = p * pl.reciprocal(jnp.sum(p, axis=-1, keepdims=True), approx=True)

    # head-batched P@V -> (H, N, hd)
    o = jnp.einsum('hnm,hmd->hnd', p.astype(cdt), v,
                   preferred_element_type=jnp.float32)

    # fused output projection: sum_h  o_h @ Wproj[h]   (no concat / relayout)
    per_head = jnp.einsum('hnd,hdc->hnc', o.astype(cdt), wproj_ref[...],
                          preferred_element_type=jnp.float32)     # (H, N, C)
    attn = jnp.sum(per_head, axis=0) + bproj_ref[0]               # (N, C) f32
    x = x + attn                                                  # residual 1

    # ---------------- MLP branch ----------------
    h2 = _layernorm(x, ln2_g_ref[0], ln2_b_ref[0])
    f1 = jnp.dot(h2.astype(cdt), w1_ref[...],
                 preferred_element_type=jnp.float32) + b1_ref[0]
    f1 = _gelu_exact(f1)
    f2 = jnp.dot(f1.astype(cdt), w2_ref[...],
                 preferred_element_type=jnp.float32) + b2_ref[0]
    x = x + f2                                                    # residual 2

    o_ref[0] = x.astype(o_ref.dtype)


def block_forward(x, params, num_heads, compute_dtype=jnp.bfloat16):
    B, N, C = x.shape
    head_dim = C // num_heads
    hidden = params["w1_t"].shape[1]
    scale = head_dim ** (-0.5)

    # Fold the attention scale into the Q columns of the (bias-free) qkv weight,
    # reshape the proj weight per head, and store matmul weights in bf16.
    wqkv = params["wqkv_t"].astype(jnp.float32)
    wqkv = wqkv.at[:, :C].multiply(scale).astype(compute_dtype)
    wproj_h = params["wproj_t"].reshape(num_heads, head_dim, C).astype(compute_dtype)
    w1 = params["w1_t"].astype(compute_dtype)
    w2 = params["w2_t"].astype(compute_dtype)

    kern = partial(block_kernel, num_heads=num_heads, head_dim=head_dim,
                   compute_dtype=compute_dtype)

    # Whole-array resident params (constant block index across the grid).
    full = lambda shape: pl.BlockSpec(shape, lambda b: (0,) * len(shape))

    return pl.pallas_call(
        kern,
        out_shape=jax.ShapeDtypeStruct((B, N, C), x.dtype),
        grid_spec=pltpu.PrefetchScalarGridSpec(
            num_scalar_prefetch=0,
            grid=(B,),
            in_specs=[
                pl.BlockSpec((1, N, C), lambda b: (b, 0, 0)),      # x
                full((1, C)), full((1, C)),                        # ln1 gamma/beta
                full((C, 3 * C)),                                  # qkv weight (scaled, bf16)
                full((num_heads, head_dim, C)), full((1, C)),      # proj weight per-head, bias
                full((1, C)), full((1, C)),                        # ln2 gamma/beta
                full((C, hidden)), full((1, hidden)),              # fc1 weight, bias
                full((hidden, C)), full((1, C)),                   # fc2 weight, bias
            ],
            out_specs=pl.BlockSpec((1, N, C), lambda b: (b, 0, 0)),
        ),
        compiler_params=pltpu.CompilerParams(
            dimension_semantics=("parallel",),
            vmem_limit_bytes=64 * 1024 * 1024),
    )(x,
      params["ln1_g"], params["ln1_b"],
      wqkv,
      wproj_h, params["bproj"],
      params["ln2_g"], params["ln2_b"],
      w1, params["b1"],
      w2, params["b2"])


def block_reference(x, params, num_heads):
    """Pure-JAX f32 reference replicating the PyTorch forward."""
    B, N, C = x.shape
    hd = C // num_heads
    scale = hd ** (-0.5)

    def ln(z, g, b):
        mu = jnp.mean(z, -1, keepdims=True)
        var = jnp.mean((z - mu) ** 2, -1, keepdims=True)
        return (z - mu) / jnp.sqrt(var + 1e-5) * g[0] + b[0]

    h = ln(x, params["ln1_g"], params["ln1_b"])
    qkv = h @ params["wqkv_t"]                              # (B,N,3C)
    qkv = qkv.reshape(B, N, 3, num_heads, hd).transpose(2, 0, 3, 1, 4)
    q, k, v = qkv[0], qkv[1], qkv[2]                        # (B,H,N,hd)
    a = (q @ k.transpose(0, 1, 3, 2)) * scale
    a = jax.nn.softmax(a, axis=-1)
    o = (a @ v).transpose(0, 2, 1, 3).reshape(B, N, C)
    o = o @ params["wproj_t"] + params["bproj"][0]
    x = x + o
    h2 = ln(x, params["ln2_g"], params["ln2_b"])
    f = h2 @ params["w1_t"] + params["b1"][0]
    f = 0.5 * f * (1.0 + jax.lax.erf(f / jnp.sqrt(2.0)))
    f = f @ params["w2_t"] + params["b2"][0]
    return x + f


def init_params(key, dim, num_heads, mlp_ratio=4.0, dtype=jnp.float32):
    hidden = int(dim * mlp_ratio)
    ks = jax.random.split(key, 8)
    s = 0.02
    return {
        "ln1_g": jnp.ones((1, dim), dtype),
        "ln1_b": jnp.zeros((1, dim), dtype),
        # nn.Linear(dim, 3*dim, bias=False) — stored pre-transposed (in, out)
        "wqkv_t": (s * jax.random.normal(ks[0], (dim, 3 * dim))).astype(dtype),
        "wproj_t": (s * jax.random.normal(ks[1], (dim, dim))).astype(dtype),
        "bproj": (s * jax.random.normal(ks[2], (1, dim))).astype(dtype),
        "ln2_g": jnp.ones((1, dim), dtype),
        "ln2_b": jnp.zeros((1, dim), dtype),
        "w1_t": (s * jax.random.normal(ks[3], (dim, hidden))).astype(dtype),
        "b1": (s * jax.random.normal(ks[4], (1, hidden))).astype(dtype),
        "w2_t": (s * jax.random.normal(ks[5], (hidden, dim))).astype(dtype),
        "b2": (s * jax.random.normal(ks[6], (1, dim))).astype(dtype),
    }


if __name__ == "__main__":
    B, N, dim, num_heads = 2, 8, 32, 4

    key = jax.random.PRNGKey(0)
    kx, kp = jax.random.split(key)
    x = jax.random.normal(kx, (B, N, dim), jnp.float32)
    params = init_params(kp, dim, num_heads)

    out = block_forward(x, params, num_heads)
    out = jax.block_until_ready(out)

    ref = block_reference(x, params, num_heads)
    assert out.shape == (B, N, dim)
    # bf16 matmul operands + approx reciprocal -> compare at 2e-3 against f32 ref
    assert jnp.allclose(out, ref, rtol=2e-3, atol=2e-3), "mismatch vs reference"

    print("KERNEL_OK")
</pallas_src>

<mosaic_0001>
module attributes {stable_mosaic.version = 11 : i64} {
  func.func @block_kernel(%arg0: i32, %arg1: memref<1x8x32xf32, #tpu.memory_space<vmem>>, %arg2: memref<1x32xf32, #tpu.memory_space<vmem>>, %arg3: memref<1x32xf32, #tpu.memory_space<vmem>>, %arg4: memref<32x96xbf16, #tpu.memory_space<vmem>>, %arg5: memref<4x8x32xbf16, #tpu.memory_space<vmem>>, %arg6: memref<1x32xf32, #tpu.memory_space<vmem>>, %arg7: memref<1x32xf32, #tpu.memory_space<vmem>>, %arg8: memref<1x32xf32, #tpu.memory_space<vmem>>, %arg9: memref<32x128xbf16, #tpu.memory_space<vmem>>, %arg10: memref<1x128xf32, #tpu.memory_space<vmem>>, %arg11: memref<128x32xbf16, #tpu.memory_space<vmem>>, %arg12: memref<1x32xf32, #tpu.memory_space<vmem>>, %arg13: memref<1x8x32xf32, #tpu.memory_space<vmem>>) attributes {dimension_semantics = [#tpu.dimension_semantics<parallel>], iteration_bounds = array<i64: 2>, scalar_prefetch = 0 : i64, scratch_operands = 0 : i64, tpu.core_type = #tpu.core_type<tc>, window_params = [{transform_indices = @transform_0, window_bounds = array<i64: 1, 8, 32>}, {pipeline_mode = #tpu.pipeline_mode<synchronous>, transform_indices = @transform_1, window_bounds = array<i64: 1, 32>}, {pipeline_mode = #tpu.pipeline_mode<synchronous>, transform_indices = @transform_2, window_bounds = array<i64: 1, 32>}, {pipeline_mode = #tpu.pipeline_mode<synchronous>, transform_indices = @transform_3, window_bounds = array<i64: 32, 96>}, {pipeline_mode = #tpu.pipeline_mode<synchronous>, transform_indices = @transform_4, window_bounds = array<i64: 4, 8, 32>}, {pipeline_mode = #tpu.pipeline_mode<synchronous>, transform_indices = @transform_5, window_bounds = array<i64: 1, 32>}, {pipeline_mode = #tpu.pipeline_mode<synchronous>, transform_indices = @transform_6, window_bounds = array<i64: 1, 32>}, {pipeline_mode = #tpu.pipeline_mode<synchronous>, transform_indices = @transform_7, window_bounds = array<i64: 1, 32>}, {pipeline_mode = #tpu.pipeline_mode<synchronous>, transform_indices = @transform_8, window_bounds = array<i64: 32, 128>}, {pipeline_mode = #tpu.pipeline_mode<synchronous>, transform_indices = @transform_9, window_bounds = array<i64: 1, 128>}, {pipeline_mode = #tpu.pipeline_mode<synchronous>, transform_indices = @transform_10, window_bounds = array<i64: 128, 32>}, {pipeline_mode = #tpu.pipeline_mode<synchronous>, transform_indices = @transform_11, window_bounds = array<i64: 1, 32>}, {transform_indices = @transform_12, window_bounds = array<i64: 1, 8, 32>}]} {
    %c0 = arith.constant 0 : index
    %c0_0 = arith.constant 0 : index
    %c0_1 = arith.constant 0 : index
    %0 = vector.load %arg1[%c0, %c0_0, %c0_1] : memref<1x8x32xf32, #tpu.memory_space<vmem>>, vector<1x8x32xf32>
    %1 = vector.shape_cast %0 : vector<1x8x32xf32> to vector<8x32xf32>
    %c0_2 = arith.constant 0 : index
    %c0_3 = arith.constant 0 : index
    %2 = vector.load %arg2[%c0_2, %c0_3] : memref<1x32xf32, #tpu.memory_space<vmem>>, vector<1x32xf32>
    %3 = vector.shape_cast %2 : vector<1x32xf32> to vector<32xf32>
    %c0_4 = arith.constant 0 : index
    %c0_5 = arith.constant 0 : index
    %4 = vector.load %arg3[%c0_4, %c0_5] : memref<1x32xf32, #tpu.memory_space<vmem>>, vector<1x32xf32>
    %5 = vector.shape_cast %4 : vector<1x32xf32> to vector<32xf32>
    %cst = arith.constant dense<0.000000e+00> : vector<8xf32>
    %6 = vector.multi_reduction <add>, %1, %cst [1] : vector<8x32xf32> to vector<8xf32>
    %7 = vector.shape_cast %6 : vector<8xf32> to vector<8x1xf32>
    %cst_6 = arith.constant 3.200000e+01 : f32
    %8 = vector.broadcast %cst_6 : f32 to vector<8x1xf32>
    %9 = arith.divf %7, %8 : vector<8x1xf32>
    %10 = vector.broadcast %9 : vector<8x1xf32> to vector<8x32xf32>
    %11 = arith.subf %1, %10 : vector<8x32xf32>
    %12 = arith.mulf %11, %11 : vector<8x32xf32>
    %cst_7 = arith.constant dense<0.000000e+00> : vector<8xf32>
    %13 = vector.multi_reduction <add>, %12, %cst_7 [1] : vector<8x32xf32> to vector<8xf32>
    %14 = vector.shape_cast %13 : vector<8xf32> to vector<8x1xf32>
    %cst_8 = arith.constant 3.200000e+01 : f32
    %15 = vector.broadcast %cst_8 : f32 to vector<8x1xf32>
    %16 = arith.divf %14, %15 : vector<8x1xf32>
    %17 = vector.broadcast %9 : vector<8x1xf32> to vector<8x32xf32>
    %18 = arith.subf %1, %17 : vector<8x32xf32>
    %cst_9 = arith.constant 9.99999974E-6 : f32
    %19 = vector.broadcast %cst_9 : f32 to vector<8x1xf32>
    %20 = arith.addf %16, %19 : vector<8x1xf32>
    %21 = math.rsqrt %20 : vector<8x1xf32>
    %22 = vector.broadcast %21 : vector<8x1xf32> to vector<8x32xf32>
    %23 = arith.mulf %18, %22 : vector<8x32xf32>
    %24 = vector.shape_cast %3 : vector<32xf32> to vector<1x32xf32>
    %25 = vector.broadcast %24 : vector<1x32xf32> to vector<8x32xf32>
    %26 = arith.mulf %23, %25 : vector<8x32xf32>
    %27 = vector.shape_cast %5 : vector<32xf32> to vector<1x32xf32>
    %28 = vector.broadcast %27 : vector<1x32xf32> to vector<8x32xf32>
    %29 = arith.addf %26, %28 : vector<8x32xf32>
    %30 = arith.truncf %29 : vector<8x32xf32> to vector<8x32xbf16>
    %c0_10 = arith.constant 0 : index
    %c0_11 = arith.constant 0 : index
    %31 = vector.load %arg4[%c0_10, %c0_11] : memref<32x96xbf16, #tpu.memory_space<vmem>>, vector<32x96xbf16>
    %cst_12 = arith.constant dense<0.000000e+00> : vector<8x96xf32>
    %32 = tpu.matmul %30, %31, %cst_12 {dimension_numbers = #tpu.dot_dimension_numbers<[1], [0], [0], [1], [0, 0, 1, 1], [], []>} : vector<8x32xbf16>, vector<32x96xbf16>, vector<8x96xf32> -> vector<8x96xf32>
    %33 = vector.extract_strided_slice %32 {offsets = [0, 0], sizes = [8, 32], strides = [1, 1]} : vector<8x96xf32> to vector<8x32xf32>
    %34 = vector.shape_cast %33 : vector<8x32xf32> to vector<8x4x8xf32>
    %35 = tpu.transpose %34, [1, 0, 2] : vector<8x4x8xf32> -> vector<4x8x8xf32>
    %36 = arith.truncf %35 : vector<4x8x8xf32> to vector<4x8x8xbf16>
    %37 = vector.extract_strided_slice %32 {offsets = [0, 32], sizes = [8, 32], strides = [1, 1]} : vector<8x96xf32> to vector<8x32xf32>
    %38 = vector.shape_cast %37 : vector<8x32xf32> to vector<8x4x8xf32>
    %39 = tpu.transpose %38, [1, 0, 2] : vector<8x4x8xf32> -> vector<4x8x8xf32>
    %40 = arith.truncf %39 : vector<4x8x8xf32> to vector<4x8x8xbf16>
    %41 = vector.extract_strided_slice %32 {offsets = [0, 64], sizes = [8, 32], strides = [1, 1]} : vector<8x96xf32> to vector<8x32xf32>
    %42 = vector.shape_cast %41 : vector<8x32xf32> to vector<8x4x8xf32>
    %43 = tpu.transpose %42, [1, 0, 2] : vector<8x4x8xf32> -> vector<4x8x8xf32>
    %44 = arith.truncf %43 : vector<4x8x8xf32> to vector<4x8x8xbf16>
    "tpu.trace_start"() <{level = 10 : i32, message = "hnd,hmd->hnm"}> : () -> ()
    %cst_13 = arith.constant dense<0.000000e+00> : vector<4x8x8xf32>
    %45 = tpu.matmul %36, %40, %cst_13 {dimension_numbers = #tpu.dot_dimension_numbers<[2], [2], [1], [1], [0, 0, 0, 1, 1, 1], [0], [0]>} : vector<4x8x8xbf16>, vector<4x8x8xbf16>, vector<4x8x8xf32> -> vector<4x8x8xf32>
    "tpu.trace_stop"() : () -> ()
    %cst_14 = arith.constant dense<0xFF800000> : vector<4x8xf32>
    %46 = vector.multi_reduction <maximumf>, %45, %cst_14 [2] : vector<4x8x8xf32> to vector<4x8xf32>
    %47 = vector.shape_cast %46 : vector<4x8xf32> to vector<4x8x1xf32>
    %48 = vector.broadcast %47 : vector<4x8x1xf32> to vector<4x8x8xf32>
    %49 = arith.subf %45, %48 : vector<4x8x8xf32>
    %50 = math.exp %49 : vector<4x8x8xf32>
    %cst_15 = arith.constant dense<0.000000e+00> : vector<4x8xf32>
    %51 = vector.multi_reduction <add>, %50, %cst_15 [2] : vector<4x8x8xf32> to vector<4x8xf32>
    %52 = vector.shape_cast %51 : vector<4x8xf32> to vector<4x8x1xf32>
    %53 = tpu.reciprocal %52 {approx = true} : vector<4x8x1xf32> -> vector<4x8x1xf32>
    %54 = vector.broadcast %53 : vector<4x8x1xf32> to vector<4x8x8xf32>
    %55 = arith.mulf %50, %54 : vector<4x8x8xf32>
    %56 = arith.truncf %55 : vector<4x8x8xf32> to vector<4x8x8xbf16>
    "tpu.trace_start"() <{level = 10 : i32, message = "hnm,hmd->hnd"}> : () -> ()
    %cst_16 = arith.constant dense<0.000000e+00> : vector<4x8x8xf32>
    %57 = tpu.matmul %56, %44, %cst_16 {dimension_numbers = #tpu.dot_dimension_numbers<[2], [1], [1], [2], [0, 0, 0, 1, 1, 2], [0], [0]>} : vector<4x8x8xbf16>, vector<4x8x8xbf16>, vector<4x8x8xf32> -> vector<4x8x8xf32>
    "tpu.trace_stop"() : () -> ()
    %58 = arith.truncf %57 : vector<4x8x8xf32> to vector<4x8x8xbf16>
    %c0_17 = arith.constant 0 : index
    %c0_18 = arith.constant 0 : index
    %c0_19 = arith.constant 0 : index
    %59 = vector.load %arg5[%c0_17, %c0_18, %c0_19] : memref<4x8x32xbf16, #tpu.memory_space<vmem>>, vector<4x8x32xbf16>
    "tpu.trace_start"() <{level = 10 : i32, message = "hnd,hdc->hnc"}> : () -> ()
    %cst_20 = arith.constant dense<0.000000e+00> : vector<4x8x32xf32>
    %60 = tpu.matmul %58, %59, %cst_20 {dimension_numbers = #tpu.dot_dimension_numbers<[2], [1], [1], [2], [0, 0, 0, 1, 1, 2], [0], [0]>} : vector<4x8x8xbf16>, vector<4x8x32xbf16>, vector<4x8x32xf32> -> vector<4x8x32xf32>
    "tpu.trace_stop"() : () -> ()
    %cst_21 = arith.constant dense<0.000000e+00> : vector<8x32xf32>
    %61 = vector.multi_reduction <add>, %60, %cst_21 [0] : vector<4x8x32xf32> to vector<8x32xf32>
    %c0_22 = arith.constant 0 : index
    %c0_23 = arith.constant 0 : index
    %62 = vector.load %arg6[%c0_22, %c0_23] : memref<1x32xf32, #tpu.memory_space<vmem>>, vector<1x32xf32>
    %63 = vector.shape_cast %62 : vector<1x32xf32> to vector<32xf32>
    %64 = vector.shape_cast %63 : vector<32xf32> to vector<1x32xf32>
    %65 = vector.broadcast %64 : vector<1x32xf32> to vector<8x32xf32>
    %66 = arith.addf %61, %65 : vector<8x32xf32>
    %67 = arith.addf %1, %66 : vector<8x32xf32>
    %c0_24 = arith.constant 0 : index
    %c0_25 = arith.constant 0 : index
    %68 = vector.load %arg7[%c0_24, %c0_25] : memref<1x32xf32, #tpu.memory_space<vmem>>, vector<1x32xf32>
    %69 = vector.shape_cast %68 : vector<1x32xf32> to vector<32xf32>
    %c0_26 = arith.constant 0 : index
    %c0_27 = arith.constant 0 : index
    %70 = vector.load %arg8[%c0_26, %c0_27] : memref<1x32xf32, #tpu.memory_space<vmem>>, vector<1x32xf32>
    %71 = vector.shape_cast %70 : vector<1x32xf32> to vector<32xf32>
    %cst_28 = arith.constant dense<0.000000e+00> : vector<8xf32>
    %72 = vector.multi_reduction <add>, %67, %cst_28 [1] : vector<8x32xf32> to vector<8xf32>
    %73 = vector.shape_cast %72 : vector<8xf32> to vector<8x1xf32>
    %cst_29 = arith.constant 3.200000e+01 : f32
    %74 = vector.broadcast %cst_29 : f32 to vector<8x1xf32>
    %75 = arith.divf %73, %74 : vector<8x1xf32>
    %76 = vector.broadcast %75 : vector<8x1xf32> to vector<8x32xf32>
    %77 = arith.subf %67, %76 : vector<8x32xf32>
    %78 = arith.mulf %77, %77 : vector<8x32xf32>
    %cst_30 = arith.constant dense<0.000000e+00> : vector<8xf32>
    %79 = vector.multi_reduction <add>, %78, %cst_30 [1] : vector<8x32xf32> to vector<8xf32>
    %80 = vector.shape_cast %79 : vector<8xf32> to vector<8x1xf32>
    %cst_31 = arith.constant 3.200000e+01 : f32
    %81 = vector.broadcast %cst_31 : f32 to vector<8x1xf32>
    %82 = arith.divf %80, %81 : vector<8x1xf32>
    %83 = vector.broadcast %75 : vector<8x1xf32> to vector<8x32xf32>
    %84 = arith.subf %67, %83 : vector<8x32xf32>
    %cst_32 = arith.constant 9.99999974E-6 : f32
    %85 = vector.broadcast %cst_32 : f32 to vector<8x1xf32>
    %86 = arith.addf %82, %85 : vector<8x1xf32>
    %87 = math.rsqrt %86 : vector<8x1xf32>
    %88 = vector.broadcast %87 : vector<8x1xf32> to vector<8x32xf32>
    %89 = arith.mulf %84, %88 : vector<8x32xf32>
    %90 = vector.shape_cast %69 : vector<32xf32> to vector<1x32xf32>
    %91 = vector.broadcast %90 : vector<1x32xf32> to vector<8x32xf32>
    %92 = arith.mulf %89, %91 : vector<8x32xf32>
    %93 = vector.shape_cast %71 : vector<32xf32> to vector<1x32xf32>
    %94 = vector.broadcast %93 : vector<1x32xf32> to vector<8x32xf32>
    %95 = arith.addf %92, %94 : vector<8x32xf32>
    %96 = arith.truncf %95 : vector<8x32xf32> to vector<8x32xbf16>
    %c0_33 = arith.constant 0 : index
    %c0_34 = arith.constant 0 : index
    %97 = vector.load %arg9[%c0_33, %c0_34] : memref<32x128xbf16, #tpu.memory_space<vmem>>, vector<32x128xbf16>
    %cst_35 = arith.constant dense<0.000000e+00> : vector<8x128xf32>
    %98 = tpu.matmul %96, %97, %cst_35 {dimension_numbers = #tpu.dot_dimension_numbers<[1], [0], [0], [1], [0, 0, 1, 1], [], []>} : vector<8x32xbf16>, vector<32x128xbf16>, vector<8x128xf32> -> vector<8x128xf32>
    %c0_36 = arith.constant 0 : index
    %c0_37 = arith.constant 0 : index
    %99 = vector.load %arg10[%c0_36, %c0_37] : memref<1x128xf32, #tpu.memory_space<vmem>>, vector<1x128xf32>
    %100 = vector.shape_cast %99 : vector<1x128xf32> to vector<128xf32>
    %101 = vector.shape_cast %100 : vector<128xf32> to vector<1x128xf32>
    %102 = vector.broadcast %101 : vector<1x128xf32> to vector<8x128xf32>
    %103 = arith.addf %98, %102 : vector<8x128xf32>
    %cst_38 = arith.constant 5.000000e-01 : f32
    %104 = vector.broadcast %cst_38 : f32 to vector<8x128xf32>
    %105 = arith.mulf %104, %103 : vector<8x128xf32>
    %cst_39 = arith.constant 0.707106769 : f32
    %106 = vector.broadcast %cst_39 : f32 to vector<8x128xf32>
    %107 = arith.mulf %103, %106 : vector<8x128xf32>
    %108 = math.erf %107 : vector<8x128xf32>
    %cst_40 = arith.constant 1.000000e+00 : f32
    %109 = vector.broadcast %cst_40 : f32 to vector<8x128xf32>
    %110 = arith.addf %109, %108 : vector<8x128xf32>
    %111 = arith.mulf %105, %110 : vector<8x128xf32>
    %112 = arith.truncf %111 : vector<8x128xf32> to vector<8x128xbf16>
    %c0_41 = arith.constant 0 : index
    %c0_42 = arith.constant 0 : index
    %113 = vector.load %arg11[%c0_41, %c0_42] : memref<128x32xbf16, #tpu.memory_space<vmem>>, vector<128x32xbf16>
    %cst_43 = arith.constant dense<0.000000e+00> : vector<8x32xf32>
    %114 = tpu.matmul %112, %113, %cst_43 {dimension_numbers = #tpu.dot_dimension_numbers<[1], [0], [0], [1], [0, 0, 1, 1], [], []>} : vector<8x128xbf16>, vector<128x32xbf16>, vector<8x32xf32> -> vector<8x32xf32>
    %c0_44 = arith.constant 0 : index
    %c0_45 = arith.constant 0 : index
    %115 = vector.load %arg12[%c0_44, %c0_45] : memref<1x32xf32, #tpu.memory_space<vmem>>, vector<1x32xf32>
    %116 = vector.shape_cast %115 : vector<1x32xf32> to vector<32xf32>
    %117 = vector.shape_cast %116 : vector<32xf32> to vector<1x32xf32>
    %118 = vector.broadcast %117 : vector<1x32xf32> to vector<8x32xf32>
    %119 = arith.addf %114, %118 : vector<8x32xf32>
    %120 = arith.addf %67, %119 : vector<8x32xf32>
    %c0_46 = arith.constant 0 : index
    %c0_47 = arith.constant 0 : index
    %c0_48 = arith.constant 0 : index
    %121 = vector.load %arg13[%c0_46, %c0_47, %c0_48] : memref<1x8x32xf32, #tpu.memory_space<vmem>>, vector<1x8x32xf32>
    %122 = vector.shape_cast %121 : vector<1x8x32xf32> to vector<8x32xf32>
    %123 = vector.shape_cast %120 : vector<8x32xf32> to vector<1x8x32xf32>
    tpu.vector_store %arg13[%c0_46, %c0_47, %c0_48], %123 {strides = array<i32>} : memref<1x8x32xf32, #tpu.memory_space<vmem>>, vector<1x8x32xf32>,
    return
  }
  func.func @transform_0(%arg0: i32) -> (i32, i32, i32) {
    %c0_i32 = arith.constant 0 : i32
    %c0_i32_0 = arith.constant 0 : i32
    %c0_i32_1 = arith.constant 0 : i32
    return %arg0, %c0_i32, %c0_i32_0 : i32, i32, i32
  }
  func.func @transform_1(%arg0: i32) -> (i32, i32) {
    %c0_i32 = arith.constant 0 : i32
    %c0_i32_0 = arith.constant 0 : i32
    %c0_i32_1 = arith.constant 0 : i32
    return %c0_i32, %c0_i32_0 : i32, i32
  }
  func.func @transform_2(%arg0: i32) -> (i32, i32) {
    %c0_i32 = arith.constant 0 : i32
    %c0_i32_0 = arith.constant 0 : i32
    %c0_i32_1 = arith.constant 0 : i32
    return %c0_i32, %c0_i32_0 : i32, i32
  }
  func.func @transform_3(%arg0: i32) -> (i32, i32) {
    %c0_i32 = arith.constant 0 : i32
    %c0_i32_0 = arith.constant 0 : i32
    %c0_i32_1 = arith.constant 0 : i32
    return %c0_i32, %c0_i32_0 : i32, i32
  }
  func.func @transform_4(%arg0: i32) -> (i32, i32, i32) {
    %c0_i32 = arith.constant 0 : i32
    %c0_i32_0 = arith.constant 0 : i32
    %c0_i32_1 = arith.constant 0 : i32
    %c0_i32_2 = arith.constant 0 : i32
    return %c0_i32, %c0_i32_0, %c0_i32_1 : i32, i32, i32
  }
  func.func @transform_5(%arg0: i32) -> (i32, i32) {
    %c0_i32 = arith.constant 0 : i32
    %c0_i32_0 = arith.constant 0 : i32
    %c0_i32_1 = arith.constant 0 : i32
    return %c0_i32, %c0_i32_0 : i32, i32
  }
  func.func @transform_6(%arg0: i32) -> (i32, i32) {
    %c0_i32 = arith.constant 0 : i32
    %c0_i32_0 = arith.constant 0 : i32
    %c0_i32_1 = arith.constant 0 : i32
    return %c0_i32, %c0_i32_0 : i32, i32
  }
  func.func @transform_7(%arg0: i32) -> (i32, i32) {
    %c0_i32 = arith.constant 0 : i32
    %c0_i32_0 = arith.constant 0 : i32
    %c0_i32_1 = arith.constant 0 : i32
    return %c0_i32, %c0_i32_0 : i32, i32
  }
  func.func @transform_8(%arg0: i32) -> (i32, i32) {
    %c0_i32 = arith.constant 0 : i32
    %c0_i32_0 = arith.constant 0 : i32
    %c0_i32_1 = arith.constant 0 : i32
    return %c0_i32, %c0_i32_0 : i32, i32
  }
  func.func @transform_9(%arg0: i32) -> (i32, i32) {
    %c0_i32 = arith.constant 0 : i32
    %c0_i32_0 = arith.constant 0 : i32
    %c0_i32_1 = arith.constant 0 : i32
    return %c0_i32, %c0_i32_0 : i32, i32
  }
  func.func @transform_10(%arg0: i32) -> (i32, i32) {
    %c0_i32 = arith.constant 0 : i32
    %c0_i32_0 = arith.constant 0 : i32
    %c0_i32_1 = arith.constant 0 : i32
    return %c0_i32, %c0_i32_0 : i32, i32
  }
  func.func @transform_11(%arg0: i32) -> (i32, i32) {
    %c0_i32 = arith.constant 0 : i32
    %c0_i32_0 = arith.constant 0 : i32
    %c0_i32_1 = arith.constant 0 : i32
    return %c0_i32, %c0_i32_0 : i32, i32
  }
  func.func @transform_12(%arg0: i32) -> (i32, i32, i32) {
    %c0_i32 = arith.constant 0 : i32
    %c0_i32_0 = arith.constant 0 : i32
    %c0_i32_1 = arith.constant 0 : i32
    return %arg0, %c0_i32, %c0_i32_0 : i32, i32, i32
  }
}

</mosaic_0001>

<llo_original>
// kernel: tpu_custom_call.1
$region0: #{tpu_custom_call.1}
  #allocation0 [shape = 'u32[]', space=smem, size = 0x4, offset = 0x4, fixed_abs, tag = 'smem constant byte address 0x4 - core index']
  #allocation1 [shape = 'u32[144,128]{1,0:T(1,128)}', space=vmem, size = 0x12000, scoped, tag = 'internal scratch']
  %s0 = inlined_call_operand.hbm [shape: f32[2,8,32], index: 0, kind: input, shape index: {}]
  %s1 = inlined_call_operand.hbm [shape: f32[1,32], index: 1, kind: input, shape index: {}]
  %s2 = inlined_call_operand.hbm [shape: f32[1,32], index: 2, kind: input, shape index: {}]
  %s3 = inlined_call_operand.hbm [shape: bf16[32,96], index: 3, kind: input, shape index: {}]
  %s4 = inlined_call_operand.hbm [shape: bf16[4,8,32], index: 4, kind: input, shape index: {}]
  %s5 = inlined_call_operand.hbm [shape: f32[1,32], index: 5, kind: input, shape index: {}]
  %s6 = inlined_call_operand.hbm [shape: f32[1,32], index: 6, kind: input, shape index: {}]
  %s7 = inlined_call_operand.hbm [shape: f32[1,32], index: 7, kind: input, shape index: {}]
  %s8 = inlined_call_operand.hbm [shape: bf16[32,128], index: 8, kind: input, shape index: {}]
  %s9 = inlined_call_operand.hbm [shape: f32[1,128], index: 9, kind: input, shape index: {}]
  %s10 = inlined_call_operand.hbm [shape: bf16[128,32], index: 10, kind: input, shape index: {}]
  %s11 = inlined_call_operand.hbm [shape: f32[1,32], index: 11, kind: input, shape index: {}]
  %s12 = inlined_call_operand.hbm [shape: f32[2,8,32], index: 12, kind: output, shape index: {}]
  %s13 = sld [smem:[#allocation0]]
  $region129: #{tpu_custom_call.1} parent=0
    _
  %s15 = ssub.s32 1, %s13
  %s16 = scalar_select 0, %s15, %s13
  $region1: #{tpu_custom_call.1} parent=0
    #allocation2 [shape = 'u8[8192]{0}', space=vmem, size = 0x2000, scoped, tag = 'input window, operand 0']
    #allocation3 [shape = 's32[2]{0}', space=sflag, size = 0x8, scoped, tag = 'scoped memory for tpu_custom_call.1']
    #allocation4 [shape = 's32[2]{0}', space=sflag, size = 0x8, scoped, tag = 'scoped memory for tpu_custom_call.1']
    #allocation5 [shape = 'u8[512]{0}', space=vmem, size = 0x400, scoped, tag = 'input window, operand 1, single buffered']
    #allocation6 [shape = 's32[1]{0}', space=sflag, size = 0x4, scoped, tag = 'scoped memory for tpu_custom_call.1']
    #allocation7 [shape = 'u8[512]{0}', space=vmem, size = 0x400, scoped, tag = 'input window, operand 2, single buffered']
    #allocation8 [shape = 'u8[8192]{0}', space=vmem, size = 0x2000, scoped, tag = 'input window, operand 3, single buffered']
    #allocation9 [shape = 's32[1]{0}', space=sflag, size = 0x4, scoped, tag = 'scoped memory for tpu_custom_call.1']
    #allocation10 [shape = 'u8[8192]{0}', space=vmem, size = 0x2000, scoped, tag = 'input window, operand 4, single buffered']
    #allocation11 [shape = 'u8[512]{0}', space=vmem, size = 0x400, scoped, tag = 'input window, operand 5, single buffered']
    #allocation12 [shape = 's32[1]{0}', space=sflag, size = 0x4, scoped, tag = 'scoped memory for tpu_custom_call.1']
    #allocation13 [shape = 'u8[512]{0}', space=vmem, size = 0x400, scoped, tag = 'input window, operand 6, single buffered']
    #allocation14 [shape = 'u8[512]{0}', space=vmem, size = 0x400, scoped, tag = 'input window, operand 7, single buffered']
    #allocation15 [shape = 's32[1]{0}', space=sflag, size = 0x4, scoped, tag = 'scoped memory for tpu_custom_call.1']
    #allocation16 [shape = 'u8[8192]{0}', space=vmem, size = 0x2000, scoped, tag = 'input window, operand 8, single buffered']
    #allocation17 [shape = 'u8[512]{0}', space=vmem, size = 0x400, scoped, tag = 'input window, operand 9, single buffered']
    #allocation18 [shape = 's32[1]{0}', space=sflag, size = 0x4, scoped, tag = 'scoped memory for tpu_custom_call.1']
    #allocation19 [shape = 'u8[32768]{0}', space=vmem, size = 0x8000, scoped, tag = 'input window, operand 10, single buffered']
    #allocation20 [shape = 'u8[512]{0}', space=vmem, size = 0x400, scoped, tag = 'input window, operand 11, single buffered']
    #allocation21 [shape = 's32[1]{0}', space=sflag, size = 0x4, scoped, tag = 'scoped memory for tpu_custom_call.1']
    #allocation22 [shape = 'u8[8192]{0}', space=vmem, size = 0x2000, scoped, tag = 'output window, operand 0']
    %17 = vsyncpa [#allocation3], 0
    %s18 = scalar_lea.sflag [#allocation3], 1
    %19 = vsyncpa %s18, 0
    %20 = vsyncpa [#allocation6], 0
    %21 = vsyncpa [#allocation9], 0
    %22 = vsyncpa [#allocation12], 0
    %23 = vsyncpa [#allocation15], 0
    %24 = vsyncpa [#allocation18], 0
    %25 = vsyncpa [#allocation21], 0
    %26 = vsyncpa [#allocation4], 0
    %s27 = scalar_lea.sflag [#allocation4], 1
    %28 = vsyncpa %s27, 0
    loop: start=0, step=1, limit=4
    $region2: #{tpu_custom_call.1} parent=1 // loop_pre_header
      _
    $region3: #{tpu_custom_call.1} parent=1 // loop_header
      %s30 = sphi 0, %s34
      %p31 = scmp.ge.s32.totalorder %s30, 4
      %s40 = sphi 0, %s42
      %s43 = sphi 0, %s40
      %s44 = sphi 0, %s43
      %s60 = sphi 0, %s44
      %s64 = sphi 0, %s64
      %s66 = sphi 0, %s64
      %s67 = sphi 0, %s66
      %s81 = sphi 0, %s67
      %s85 = sphi 0, %s85
      %s87 = sphi 0, %s85
      %s88 = sphi 0, %s87
      %s102 = sphi 0, %s88
      %s106 = sphi 0, %s106
      %s108 = sphi 0, %s106
      %s109 = sphi 0, %s108
      %s123 = sphi 0, %s109
      %s127 = sphi 0, %s127
      %s129 = sphi 0, %s127
      %s130 = sphi 0, %s129
      %s144 = sphi 0, %s130
      %s148 = sphi 0, %s148
      %s150 = sphi 0, %s148
      %s151 = sphi 0, %s150
      %s165 = sphi 0, %s151
      %s169 = sphi 0, %s169
      %s171 = sphi 0, %s169
      %s172 = sphi 0, %s171
      %s186 = sphi 0, %s172
      %s190 = sphi 0, %s190
      %s192 = sphi 0, %s190
      %s193 = sphi 0, %s192
      %s207 = sphi 0, %s193
      %s211 = sphi 0, %s211
      %s213 = sphi 0, %s211
      %s214 = sphi 0, %s213
      %s228 = sphi 0, %s214
      %s232 = sphi 0, %s232
      %s234 = sphi 0, %s232
      %s235 = sphi 0, %s234
      %s249 = sphi 0, %s235
      %s253 = sphi 0, %s253
      %s255 = sphi 0, %s253
      %s256 = sphi 0, %s255
      %s270 = sphi 0, %s256
      %s274 = sphi 0, %s274
      %s276 = sphi 0, %s274
      %s277 = sphi 0, %s276
      %s291 = sphi 0, %s277
      %s297 = sphi 0, %s299
      %s300 = sphi 0, %s297
      %s301 = sphi 0, %s300
      %s317 = sphi 0, %s301
    $region4: #{tpu_custom_call.1} parent=1 // loop_header_branch
      %33 = sbr.rel (%p31) target = $region8
    $region5: #{tpu_custom_call.1} parent=1 // loop_body
      %s35 = ssub.s32 %s30, 1
      %s36 = ssub.s32 %s30, 2
      %s37 = sadd.s32 %s30, 1
      %s38 = ssub.s32 %s30, %s37
      %p39 = scmp.eq.s32.totalorder %s38, 0
      %s41 = sadd.s32 %s40, 1
      %s42 = scalar_select %p39, %s40, %s41
      %p45 = pneg %p39
      %p46 = scmp.eq.s32.totalorder %s30, 1
      %p47 = por %p45, %p46
      %p48 = scmp.ne.s32.totalorder %s40, %s43
      %p49 = scmp.eq.s32.totalorder %s30, 0
      %p50 = por %p48, %p49
      %p51 = scmp.ne.s32.totalorder %s40, %s43
      %p52 = scmp.eq.s32.totalorder %s35, 1
      %p53 = por %p51, %p52
      %p54 = scmp.ne.s32.totalorder %s43, %s44
      %p55 = scmp.eq.s32.totalorder %s35, 0
      %p56 = por %p54, %p55
      %p57 = scmp.ne.s32.totalorder %s43, %s44
      %p58 = scmp.eq.s32.totalorder %s36, 1
      %p59 = por %p57, %p58
      %p61 = scmp.ne.s32.totalorder %s44, %s60
      %p62 = scmp.eq.s32.totalorder %s36, 0
      %p63 = por %p61, %p62
      %s65 = sadd.s32 %s64, 1
      %p68 = scmp.eq.s32.totalorder %s30, 1
      %p69 = scmp.ne.s32.totalorder %s64, %s66
      %p70 = scmp.eq.s32.totalorder %s30, 0
      %p71 = por %p69, %p70
      %p72 = scmp.ne.s32.totalorder %s64, %s66
      %p73 = scmp.eq.s32.totalorder %s35, 1
      %p74 = por %p72, %p73
      %p75 = scmp.ne.s32.totalorder %s66, %s67
      %p76 = scmp.eq.s32.totalorder %s35, 0
      %p77 = por %p75, %p76
      %p78 = scmp.ne.s32.totalorder %s66, %s67
      %p79 = scmp.eq.s32.totalorder %s36, 1
      %p80 = por %p78, %p79
      %p82 = scmp.ne.s32.totalorder %s67, %s81
      %p83 = scmp.eq.s32.totalorder %s36, 0
      %p84 = por %p82, %p83
      %s86 = sadd.s32 %s85, 1
      %p89 = scmp.eq.s32.totalorder %s30, 1
      %p90 = scmp.ne.s32.totalorder %s85, %s87
      %p91 = scmp.eq.s32.totalorder %s30, 0
      %p92 = por %p90, %p91
      %p93 = scmp.ne.s32.totalorder %s85, %s87
      %p94 = scmp.eq.s32.totalorder %s35, 1
      %p95 = por %p93, %p94
      %p96 = scmp.ne.s32.totalorder %s87, %s88
      %p97 = scmp.eq.s32.totalorder %s35, 0
      %p98 = por %p96, %p97
      %p99 = scmp.ne.s32.totalorder %s87, %s88
      %p100 = scmp.eq.s32.totalorder %s36, 1
      %p101 = por %p99, %p100
      %p103 = scmp.ne.s32.totalorder %s88, %s102
      %p104 = scmp.eq.s32.totalorder %s36, 0
      %p105 = por %p103, %p104
      %s107 = sadd.s32 %s106, 1
      %p110 = scmp.eq.s32.totalorder %s30, 1
      %p111 = scmp.ne.s32.totalorder %s106, %s108
      %p112 = scmp.eq.s32.totalorder %s30, 0
      %p113 = por %p111, %p112
      %p114 = scmp.ne.s32.totalorder %s106, %s108
      %p115 = scmp.eq.s32.totalorder %s35, 1
      %p116 = por %p114, %p115
      %p117 = scmp.ne.s32.totalorder %s108, %s109
      %p118 = scmp.eq.s32.totalorder %s35, 0
      %p119 = por %p117, %p118
      %p120 = scmp.ne.s32.totalorder %s108, %s109
      %p121 = scmp.eq.s32.totalorder %s36, 1
      %p122 = por %p120, %p121
      %p124 = scmp.ne.s32.totalorder %s109, %s123
      %p125 = scmp.eq.s32.totalorder %s36, 0
      %p126 = por %p124, %p125
      %s128 = sadd.s32 %s127, 1
      %p131 = scmp.eq.s32.totalorder %s30, 1
      %p132 = scmp.ne.s32.totalorder %s127, %s129
      %p133 = scmp.eq.s32.totalorder %s30, 0
      %p134 = por %p132, %p133
      %p135 = scmp.ne.s32.totalorder %s127, %s129
      %p136 = scmp.eq.s32.totalorder %s35, 1
      %p137 = por %p135, %p136
      %p138 = scmp.ne.s32.totalorder %s129, %s130
      %p139 = scmp.eq.s32.totalorder %s35, 0
      %p140 = por %p138, %p139
      %p141 = scmp.ne.s32.totalorder %s129, %s130
      %p142 = scmp.eq.s32.totalorder %s36, 1
      %p143 = por %p141, %p142
      %p145 = scmp.ne.s32.totalorder %s130, %s144
      %p146 = scmp.eq.s32.totalorder %s36, 0
      %p147 = por %p145, %p146
      %s149 = sadd.s32 %s148, 1
      %p152 = scmp.eq.s32.totalorder %s30, 1
      %p153 = scmp.ne.s32.totalorder %s148, %s150
      %p154 = scmp.eq.s32.totalorder %s30, 0
      %p155 = por %p153, %p154
      %p156 = scmp.ne.s32.totalorder %s148, %s150
      %p157 = scmp.eq.s32.totalorder %s35, 1
      %p158 = por %p156, %p157
      %p159 = scmp.ne.s32.totalorder %s150, %s151
      %p160 = scmp.eq.s32.totalorder %s35, 0
      %p161 = por %p159, %p160
      %p162 = scmp.ne.s32.totalorder %s150, %s151
      %p163 = scmp.eq.s32.totalorder %s36, 1
      %p164 = por %p162, %p163
      %p166 = scmp.ne.s32.totalorder %s151, %s165
      %p167 = scmp.eq.s32.totalorder %s36, 0
      %p168 = por %p166, %p167
      %s170 = sadd.s32 %s169, 1
      %p173 = scmp.eq.s32.totalorder %s30, 1
      %p174 = scmp.ne.s32.totalorder %s169, %s171
      %p175 = scmp.eq.s32.totalorder %s30, 0
      %p176 = por %p174, %p175
      %p177 = scmp.ne.s32.totalorder %s169, %s171
      %p178 = scmp.eq.s32.totalorder %s35, 1
      %p179 = por %p177, %p178
      %p180 = scmp.ne.s32.totalorder %s171, %s172
      %p181 = scmp.eq.s32.totalorder %s35, 0
      %p182 = por %p180, %p181
      %p183 = scmp.ne.s32.totalorder %s171, %s172
      %p184 = scmp.eq.s32.totalorder %s36, 1
      %p185 = por %p183, %p184
      %p187 = scmp.ne.s32.totalorder %s172, %s186
      %p188 = scmp.eq.s32.totalorder %s36, 0
      %p189 = por %p187, %p188
      %s191 = sadd.s32 %s190, 1
      %p194 = scmp.eq.s32.totalorder %s30, 1
      %p195 = scmp.ne.s32.totalorder %s190, %s192
      %p196 = scmp.eq.s32.totalorder %s30, 0
      %p197 = por %p195, %p196
      %p198 = scmp.ne.s32.totalorder %s190, %s192
      %p199 = scmp.eq.s32.totalorder %s35, 1
      %p200 = por %p198, %p199
      %p201 = scmp.ne.s32.totalorder %s192, %s193
      %p202 = scmp.eq.s32.totalorder %s35, 0
      %p203 = por %p201, %p202
      %p204 = scmp.ne.s32.totalorder %s192, %s193
      %p205 = scmp.eq.s32.totalorder %s36, 1
      %p206 = por %p204, %p205
      %p208 = scmp.ne.s32.totalorder %s193, %s207
      %p209 = scmp.eq.s32.totalorder %s36, 0
      %p210 = por %p208, %p209
      %s212 = sadd.s32 %s211, 1
      %p215 = scmp.eq.s32.totalorder %s30, 1
      %p216 = scmp.ne.s32.totalorder %s211, %s213
      %p217 = scmp.eq.s32.totalorder %s30, 0
      %p218 = por %p216, %p217
      %p219 = scmp.ne.s32.totalorder %s211, %s213
      %p220 = scmp.eq.s32.totalorder %s35, 1
      %p221 = por %p219, %p220
      %p222 = scmp.ne.s32.totalorder %s213, %s214
      %p223 = scmp.eq.s32.totalorder %s35, 0
      %p224 = por %p222, %p223
      %p225 = scmp.ne.s32.totalorder %s213, %s214
      %p226 = scmp.eq.s32.totalorder %s36, 1
      %p227 = por %p225, %p226
      %p229 = scmp.ne.s32.totalorder %s214, %s228
      %p230 = scmp.eq.s32.totalorder %s36, 0
      %p231 = por %p229, %p230
      %s233 = sadd.s32 %s232, 1
      %p236 = scmp.eq.s32.totalorder %s30, 1
      %p237 = scmp.ne.s32.totalorder %s232, %s234
      %p238 = scmp.eq.s32.totalorder %s30, 0
      %p239 = por %p237, %p238
      %p240 = scmp.ne.s32.totalorder %s232, %s234
      %p241 = scmp.eq.s32.totalorder %s35, 1
      %p242 = por %p240, %p241
      %p243 = scmp.ne.s32.totalorder %s234, %s235
      %p244 = scmp.eq.s32.totalorder %s35, 0
      %p245 = por %p243, %p244
      %p246 = scmp.ne.s32.totalorder %s234, %s235
      %p247 = scmp.eq.s32.totalorder %s36, 1
      %p248 = por %p246, %p247
      %p250 = scmp.ne.s32.totalorder %s235, %s249
      %p251 = scmp.eq.s32.totalorder %s36, 0
      %p252 = por %p250, %p251
      %s254 = sadd.s32 %s253, 1
      %p257 = scmp.eq.s32.totalorder %s30, 1
      %p258 = scmp.ne.s32.totalorder %s253, %s255
      %p259 = scmp.eq.s32.totalorder %s30, 0
      %p260 = por %p258, %p259
      %p261 = scmp.ne.s32.totalorder %s253, %s255
      %p262 = scmp.eq.s32.totalorder %s35, 1
      %p263 = por %p261, %p262
      %p264 = scmp.ne.s32.totalorder %s255, %s256
      %p265 = scmp.eq.s32.totalorder %s35, 0
      %p266 = por %p264, %p265
      %p267 = scmp.ne.s32.totalorder %s255, %s256
      %p268 = scmp.eq.s32.totalorder %s36, 1
      %p269 = por %p267, %p268
      %p271 = scmp.ne.s32.totalorder %s256, %s270
      %p272 = scmp.eq.s32.totalorder %s36, 0
      %p273 = por %p271, %p272
      %s275 = sadd.s32 %s274, 1
      %p278 = scmp.eq.s32.totalorder %s30, 1
      %p279 = scmp.ne.s32.totalorder %s274, %s276
      %p280 = scmp.eq.s32.totalorder %s30, 0
      %p281 = por %p279, %p280
      %p282 = scmp.ne.s32.totalorder %s274, %s276
      %p283 = scmp.eq.s32.totalorder %s35, 1
      %p284 = por %p282, %p283
      %p285 = scmp.ne.s32.totalorder %s276, %s277
      %p286 = scmp.eq.s32.totalorder %s35, 0
      %p287 = por %p285, %p286
      %p288 = scmp.ne.s32.totalorder %s276, %s277
      %p289 = scmp.eq.s32.totalorder %s36, 1
      %p290 = por %p288, %p289
      %p292 = scmp.ne.s32.totalorder %s277, %s291
      %p293 = scmp.eq.s32.totalorder %s36, 0
      %p294 = por %p292, %p293
      %s295 = ssub.s32 %s30, %s37
      %p296 = scmp.eq.s32.totalorder %s295, 0
      %s298 = sadd.s32 %s297, 1
      %s299 = scalar_select %p296, %s297, %s298
      %p302 = pneg %p296
      %p303 = scmp.eq.s32.totalorder %s30, 1
      %p304 = por %p302, %p303
      %p305 = scmp.ne.s32.totalorder %s297, %s300
      %p306 = scmp.eq.s32.totalorder %s30, 0
      %p307 = por %p305, %p306
      %p308 = scmp.ne.s32.totalorder %s297, %s300
      %p309 = scmp.eq.s32.totalorder %s35, 1
      %p310 = por %p308, %p309
      %p311 = scmp.ne.s32.totalorder %s300, %s301
      %p312 = scmp.eq.s32.totalorder %s35, 0
      %p313 = por %p311, %p312
      %p314 = scmp.ne.s32.totalorder %s300, %s301
      %p315 = scmp.eq.s32.totalorder %s36, 1
      %p316 = por %p314, %p315
      %p318 = scmp.ne.s32.totalorder %s301, %s317
      %p319 = scmp.eq.s32.totalorder %s36, 0
      %p320 = por %p318, %p319
      %p321 = scmp.le.s32.totalorder 1, %s30
      %p322 = scmp.lt.s32.totalorder %s30, 3
      %p323 = pnand %p321, %p322
      %p324 = pneg %p323
      // Predicated region
      $region9: #{tpu_custom_call.1} parent=5 // pred_check
        _
      $region10: #{tpu_custom_call.1} parent=5 // pred_check_branch
        %326 = sbr.rel (%p323) target = $region12
      $region11: #{tpu_custom_call.1} parent=5 // pred_region
        %s327 = ssub.s32 %s30, 1
        // Predicated region
        $region13: #{tpu_custom_call.1} parent=11 // pred_check
          %p328 = pneg %p77
        $region14: #{tpu_custom_call.1} parent=11 // pred_check_branch
          %330 = sbr.rel (%p328) target = $region16
        $region15: #{tpu_custom_call.1} parent=11 // pred_region
          %s332 = ssub.s32 16, 16
          %333 = vsyncadd [#allocation6], %s332
          %s335 = sshll.u32 [#allocation5], 4
          %s336 = int_to_ptr.vmem [resolvable:$true] %s335
          %338 = dma.hbm_to_vmem [thread:$0]  %s1, 16, %s336, [#allocation6]
        $region16: #{tpu_custom_call.1} parent=11 // pred_fallthru
          _
        // Predicated region
        $region17: #{tpu_custom_call.1} parent=11 // pred_check
          %p339 = pneg %p98
        $region18: #{tpu_custom_call.1} parent=11 // pred_check_branch
          %341 = sbr.rel (%p339) target = $region20
        $region19: #{tpu_custom_call.1} parent=11 // pred_region
          %s343 = ssub.s32 16, 16
          %344 = vsyncadd [#allocation6], %s343
          %s346 = sshll.u32 [#allocation7], 4
          %s347 = int_to_ptr.vmem [resolvable:$true] %s346
          %349 = dma.hbm_to_vmem [thread:$0]  %s2, 16, %s347, [#allocation6]
        $region20: #{tpu_custom_call.1} parent=11 // pred_fallthru
          _
        // Predicated region
        $region21: #{tpu_custom_call.1} parent=11 // pred_check
          %p350 = pneg %p119
        $region22: #{tpu_custom_call.1} parent=11 // pred_check_branch
          %352 = sbr.rel (%p350) target = $region24
        $region23: #{tpu_custom_call.1} parent=11 // pred_region
          %s354 = ssub.s32 256, 256
          %355 = vsyncadd [#allocation9], %s354
          %s356 = sshll.u32 [#allocation8], 4
          %s357 = int_to_ptr.vmem [resolvable:$true] %s356
          %362 = dma.hbm_to_vmem [thread:$0]  %s3, 256, %s357, [#allocation9], 64, 64, 4
        $region24: #{tpu_custom_call.1} parent=11 // pred_fallthru
          _
        // Predicated region
        $region25: #{tpu_custom_call.1} parent=11 // pred_check
          %p363 = pneg %p140
        $region26: #{tpu_custom_call.1} parent=11 // pred_check_branch
          %365 = sbr.rel (%p363) target = $region28
        $region27: #{tpu_custom_call.1} parent=11 // pred_region
          %s367 = ssub.s32 256, 256
          %368 = vsyncadd [#allocation9], %s367
          %s369 = sshll.u32 [#allocation10], 4
          %s370 = int_to_ptr.vmem [resolvable:$true] %s369
          %375 = dma.hbm_to_vmem [thread:$0]  %s4, 256, %s370, [#allocation9], 64, 64, 4
        $region28: #{tpu_custom_call.1} parent=11 // pred_fallthru
          _
        // Predicated region
        $region29: #{tpu_custom_call.1} parent=11 // pred_check
          %p376 = pneg %p161
        $region30: #{tpu_custom_call.1} parent=11 // pred_check_branch
          %378 = sbr.rel (%p376) target = $region32
        $region31: #{tpu_custom_call.1} parent=11 // pred_region
          %s380 = ssub.s32 16, 16
          %381 = vsyncadd [#allocation12], %s380
          %s383 = sshll.u32 [#allocation11], 4
          %s384 = int_to_ptr.vmem [resolvable:$true] %s383
          %386 = dma.hbm_to_vmem [thread:$0]  %s5, 16, %s384, [#allocation12]
        $region32: #{tpu_custom_call.1} parent=11 // pred_fallthru
          _
        // Predicated region
        $region33: #{tpu_custom_call.1} parent=11 // pred_check
          %p387 = pneg %p182
        $region34: #{tpu_custom_call.1} parent=11 // pred_check_branch
          %389 = sbr.rel (%p387) target = $region36
        $region35: #{tpu_custom_call.1} parent=11 // pred_region
          %s391 = ssub.s32 16, 16
          %392 = vsyncadd [#allocation12], %s391
          %s394 = sshll.u32 [#allocation13], 4
          %s395 = int_to_ptr.vmem [resolvable:$true] %s394
          %397 = dma.hbm_to_vmem [thread:$0]  %s6, 16, %s395, [#allocation12]
        $region36: #{tpu_custom_call.1} parent=11 // pred_fallthru
          _
        // Predicated region
        $region37: #{tpu_custom_call.1} parent=11 // pred_check
          %p398 = pneg %p203
        $region38: #{tpu_custom_call.1} parent=11 // pred_check_branch
          %400 = sbr.rel (%p398) target = $region40
        $region39: #{tpu_custom_call.1} parent=11 // pred_region
          %s402 = ssub.s32 16, 16
          %403 = vsyncadd [#allocation15], %s402
          %s405 = sshll.u32 [#allocation14], 4
          %s406 = int_to_ptr.vmem [resolvable:$true] %s405
          %408 = dma.hbm_to_vmem [thread:$0]  %s7, 16, %s406, [#allocation15]
        $region40: #{tpu_custom_call.1} parent=11 // pred_fallthru
          _
        // Predicated region
        $region41: #{tpu_custom_call.1} parent=11 // pred_check
          %p409 = pneg %p224
        $region42: #{tpu_custom_call.1} parent=11 // pred_check_branch
          %411 = sbr.rel (%p409) target = $region44
        $region43: #{tpu_custom_call.1} parent=11 // pred_region
          %s413 = ssub.s32 256, 256
          %414 = vsyncadd [#allocation15], %s413
          %s415 = sshll.u32 [#allocation16], 4
          %s416 = int_to_ptr.vmem [resolvable:$true] %s415
          %421 = dma.hbm_to_vmem [thread:$0]  %s8, 256, %s416, [#allocation15], 64, 64, 4
        $region44: #{tpu_custom_call.1} parent=11 // pred_fallthru
          _
        // Predicated region
        $region45: #{tpu_custom_call.1} parent=11 // pred_check
          %p422 = pneg %p245
        $region46: #{tpu_custom_call.1} parent=11 // pred_check_branch
          %424 = sbr.rel (%p422) target = $region48
        $region47: #{tpu_custom_call.1} parent=11 // pred_region
          %s426 = ssub.s32 16, 16
          %427 = vsyncadd [#allocation18], %s426
          %s429 = sshll.u32 [#allocation17], 4
          %s430 = int_to_ptr.vmem [resolvable:$true] %s429
          %432 = dma.hbm_to_vmem [thread:$0]  %s9, 16, %s430, [#allocation18]
        $region48: #{tpu_custom_call.1} parent=11 // pred_fallthru
          _
        // Predicated region
        $region49: #{tpu_custom_call.1} parent=11 // pred_check
          %p433 = pneg %p266
        $region50: #{tpu_custom_call.1} parent=11 // pred_check_branch
          %435 = sbr.rel (%p433) target = $region52
        $region51: #{tpu_custom_call.1} parent=11 // pred_region
          %s437 = ssub.s32 1024, 1024
          %438 = vsyncadd [#allocation18], %s437
          %s439 = sshll.u32 [#allocation19], 4
          %s440 = int_to_ptr.vmem [resolvable:$true] %s439
          %445 = dma.hbm_to_vmem [thread:$0]  %s10, 1024, %s440, [#allocation18], 64, 64, 4
        $region52: #{tpu_custom_call.1} parent=11 // pred_fallthru
          _
        // Predicated region
        $region53: #{tpu_custom_call.1} parent=11 // pred_check
          %p446 = pneg %p287
        $region54: #{tpu_custom_call.1} parent=11 // pred_check_branch
          %448 = sbr.rel (%p446) target = $region56
        $region55: #{tpu_custom_call.1} parent=11 // pred_region
          %s450 = ssub.s32 16, 16
          %451 = vsyncadd [#allocation21], %s450
          %s453 = sshll.u32 [#allocation20], 4
          %s454 = int_to_ptr.vmem [resolvable:$true] %s453
          %456 = dma.hbm_to_vmem [thread:$0]  %s11, 16, %s454, [#allocation21]
        $region56: #{tpu_custom_call.1} parent=11 // pred_fallthru
          _
      $region12: #{tpu_custom_call.1} parent=5 // pred_fallthru
        _
      %p457 = scmp.lt.s32.totalorder %s30, 2
      // Predicated region
      $region57: #{tpu_custom_call.1} parent=5 // pred_check
        %p458 = pneg %p457
      $region58: #{tpu_custom_call.1} parent=5 // pred_check_branch
        %460 = sbr.rel (%p458) target = $region60
      $region59: #{tpu_custom_call.1} parent=5 // pred_region
        // Predicated region
        $region61: #{tpu_custom_call.1} parent=59 // pred_check
          %p461 = pneg %p50
        $region62: #{tpu_custom_call.1} parent=59 // pred_check_branch
          %463 = sbr.rel (%p461) target = $region64
        $region63: #{tpu_custom_call.1} parent=59 // pred_region
          %s464 = sand.u32 %s40, 1
          %s465 = scalar_lea.sflag [#allocation3], %s464
          %s466 = sand.u32 %s40, 1
          %s467 = smul.addr %s466, 8
          %s468 = scalar_lea.vmem [#allocation2], %s467
          %s470 = ssub.s32 128, 128
          %471 = vsyncadd %s465, %s470
          %s472 = smul.addr %s30, 128
          %s473 = scalar_lea.hbm %s0, %s472
          %s475 = sshll.u32 %s468, 4
          %s476 = int_to_ptr.vmem [resolvable:$true] %s475
          %478 = dma.hbm_to_vmem [thread:$0]  %s473, 128, %s476, %s465
        $region64: #{tpu_custom_call.1} parent=59 // pred_fallthru
          _
      $region60: #{tpu_custom_call.1} parent=5 // pred_fallthru
        _
      %p479 = scmp.le.s32.totalorder 1, %s30
      %p480 = scmp.lt.s32.totalorder %s30, 3
      %p481 = pnand %p479, %p480
      %p482 = pneg %p481
      // Predicated region
      $region65: #{tpu_custom_call.1} parent=5 // pred_check
        _
      $region66: #{tpu_custom_call.1} parent=5 // pred_check_branch
        %484 = sbr.rel (%p481) target = $region68
      $region67: #{tpu_custom_call.1} parent=5 // pred_region
        %s485 = ssub.s32 %s30, 1
        %s486 = sand.u32 %s43, 1
        %s487 = scalar_lea.sflag [#allocation3], %s486
        %s488 = sand.u32 %s43, 1
        %s489 = smul.addr %s488, 8
        %s490 = scalar_lea.vmem [#allocation2], %s489
        // Predicated region
        $region69: #{tpu_custom_call.1} parent=67 // pred_check
          %p491 = pneg %p56
        $region70: #{tpu_custom_call.1} parent=67 // pred_check_branch
          %493 = sbr.rel (%p491) target = $region72
        $region71: #{tpu_custom_call.1} parent=67 // pred_region
          %494 = dma.done %s487, 128
        $region72: #{tpu_custom_call.1} parent=67 // pred_fallthru
          _
        // Predicated region
        $region73: #{tpu_custom_call.1} parent=67 // pred_check
          %p495 = pneg %p77
        $region74: #{tpu_custom_call.1} parent=67 // pred_check_branch
          %497 = sbr.rel (%p495) target = $region76
        $region75: #{tpu_custom_call.1} parent=67 // pred_region
          %498 = dma.done [#allocation6], 16
        $region76: #{tpu_custom_call.1} parent=67 // pred_fallthru
          _
        // Predicated region
        $region77: #{tpu_custom_call.1} parent=67 // pred_check
          %p499 = pneg %p98
        $region78: #{tpu_custom_call.1} parent=67 // pred_check_branch
          %501 = sbr.rel (%p499) target = $region80
        $region79: #{tpu_custom_call.1} parent=67 // pred_region
          %502 = dma.done [#allocation6], 16
        $region80: #{tpu_custom_call.1} parent=67 // pred_fallthru
          _
        // Predicated region
        $region81: #{tpu_custom_call.1} parent=67 // pred_check
          %p503 = pneg %p119
        $region82: #{tpu_custom_call.1} parent=67 // pred_check_branch
          %505 = sbr.rel (%p503) target = $region84
        $region83: #{tpu_custom_call.1} parent=67 // pred_region
          %506 = dma.done [#allocation9], 256
        $region84: #{tpu_custom_call.1} parent=67 // pred_fallthru
          _
        // Predicated region
        $region85: #{tpu_custom_call.1} parent=67 // pred_check
          %p507 = pneg %p140
        $region86: #{tpu_custom_call.1} parent=67 // pred_check_branch
          %509 = sbr.rel (%p507) target = $region88
        $region87: #{tpu_custom_call.1} parent=67 // pred_region
          %510 = dma.done [#allocation9], 256
        $region88: #{tpu_custom_call.1} parent=67 // pred_fallthru
          _
        // Predicated region
        $region89: #{tpu_custom_call.1} parent=67 // pred_check
          %p511 = pneg %p161
        $region90: #{tpu_custom_call.1} parent=67 // pred_check_branch
          %513 = sbr.rel (%p511) target = $region92
        $region91: #{tpu_custom_call.1} parent=67 // pred_region
          %514 = dma.done [#allocation12], 16
        $region92: #{tpu_custom_call.1} parent=67 // pred_fallthru
          _
        // Predicated region
        $region93: #{tpu_custom_call.1} parent=67 // pred_check
          %p515 = pneg %p182
        $region94: #{tpu_custom_call.1} parent=67 // pred_check_branch
          %517 = sbr.rel (%p515) target = $region96
        $region95: #{tpu_custom_call.1} parent=67 // pred_region
          %518 = dma.done [#allocation12], 16
        $region96: #{tpu_custom_call.1} parent=67 // pred_fallthru
          _
        // Predicated region
        $region97: #{tpu_custom_call.1} parent=67 // pred_check
          %p519 = pneg %p203
        $region98: #{tpu_custom_call.1} parent=67 // pred_check_branch
          %521 = sbr.rel (%p519) target = $region100
        $region99: #{tpu_custom_call.1} parent=67 // pred_region
          %522 = dma.done [#allocation15], 16
        $region100: #{tpu_custom_call.1} parent=67 // pred_fallthru
          _
        // Predicated region
        $region101: #{tpu_custom_call.1} parent=67 // pred_check
          %p523 = pneg %p224
        $region102: #{tpu_custom_call.1} parent=67 // pred_check_branch
          %525 = sbr.rel (%p523) target = $region104
        $region103: #{tpu_custom_call.1} parent=67 // pred_region
          %526 = dma.done [#allocation15], 256
        $region104: #{tpu_custom_call.1} parent=67 // pred_fallthru
          _
        // Predicated region
        $region105: #{tpu_custom_call.1} parent=67 // pred_check
          %p527 = pneg %p245
        $region106: #{tpu_custom_call.1} parent=67 // pred_check_branch
          %529 = sbr.rel (%p527) target = $region108
        $region107: #{tpu_custom_call.1} parent=67 // pred_region
          %530 = dma.done [#allocation18], 16
        $region108: #{tpu_custom_call.1} parent=67 // pred_fallthru
          _
        // Predicated region
        $region109: #{tpu_custom_call.1} parent=67 // pred_check
          %p531 = pneg %p266
        $region110: #{tpu_custom_call.1} parent=67 // pred_check_branch
          %533 = sbr.rel (%p531) target = $region112
        $region111: #{tpu_custom_call.1} parent=67 // pred_region
          %534 = dma.done [#allocation18], 1024
        $region112: #{tpu_custom_call.1} parent=67 // pred_fallthru
          _
        // Predicated region
        $region113: #{tpu_custom_call.1} parent=67 // pred_check
          %p535 = pneg %p287
        $region114: #{tpu_custom_call.1} parent=67 // pred_check_branch
          %537 = sbr.rel (%p535) target = $region116
        $region115: #{tpu_custom_call.1} parent=67 // pred_region
          %538 = dma.done [#allocation21], 16
        $region116: #{tpu_custom_call.1} parent=67 // pred_fallthru
          _
        %s539 = sand.u32 %s43, 1
        %s540 = scalar_lea.sflag [#allocation3], %s539
        %s541 = sand.u32 %s43, 1
        %s542 = smul.addr %s541, 8
        %s543 = scalar_lea.vmem [#allocation2], %s542
        %p544 = pneg %p56
        %p545 = pneg %p53
        %p546 = pneg %p77
        %p547 = pneg %p74
        %p548 = pneg %p98
        %p549 = pneg %p95
        %p550 = pneg %p119
        %p551 = pneg %p116
        %p552 = pneg %p140
        %p553 = pneg %p137
        %p554 = pneg %p161
        %p555 = pneg %p158
        %p556 = pneg %p182
        %p557 = pneg %p179
        %p558 = pneg %p203
        %p559 = pneg %p200
        %p560 = pneg %p224
        %p561 = pneg %p221
        %p562 = pneg %p245
        %p563 = pneg %p242
        %p564 = pneg %p266
        %p565 = pneg %p263
        %p566 = pneg %p287
        %p567 = pneg %p284
        %p568 = pneg %p313
        %p569 = pneg %p310
        %s570 = sand.u32 %s300, 1
        %s571 = scalar_lea.sflag [#allocation4], %s570
        %s572 = sand.u32 %s300, 1
        %s573 = smul.addr %s572, 8
        %s574 = scalar_lea.vmem [#allocation22], %s573
        %v576 = vld [vmem:[%s490] sm:$0xff]
        %v577 = vld [vmem:[#allocation5] sm:$0x1]
        %v578 = vld [vmem:[#allocation7] sm:$0x1]
        %vm579 = vcmask 261120
        %v580 = vsel %vm579, %v576, 0.0
        %581 = vadd.xlane.f32.xlu0 %v580
        %v582 = vpop.xlane.xlu0 %581
        %v583 = vrcp.pop 32.0
        %v584 = vmul.f32 %v582, %v583
        %v585 = vsub.f32 %v576, %v584
        %v586 = vmul.f32 %v585, %v585
        %v587 = vsel %vm579, %v586, 0.0
        %588 = vadd.xlane.f32.xlu0 %v587
        %v589 = vpop.xlane.xlu0 %588
        %v590 = vmul.f32 %v589, %v583
        %v591 = vadd.f32 %v590, 1e-05
        %v592 = vrsqrt.pop %v591
        %v593 = vmul.f32 %v585, %v592
        %v595 = vlaneseq
        %v596 = vshrl.u32 %v595, 7
        %v597 = vsub.s32 0, %v596
        %v598 = vrot.slane %v577, %v597
        %v600 = vmul.f32 %v593, %v598
        %v602 = vlaneseq
        %v603 = vshrl.u32 %v602, 7
        %v604 = vsub.s32 0, %v603
        %v605 = vrot.slane %v578, %v604
        %v607 = vadd.f32 %v600, %v605
        %v608 = vpack.c.bf16 %v607, %v607
        %v609 = vld [vmem:[#allocation8] sm:$0xf]
        %v610 = vld [vmem:[#allocation8 + $0x4] sm:$0xf]
        %v611 = vld [vmem:[#allocation8 + $0x8] sm:$0xf]
        %v612 = vld [vmem:[#allocation8 + $0xc] sm:$0xf]
        %v617 = vunpack.c.l.b16 %v609
        %v618 = vunpack.c.l.b16 %v610
        %v619 = vunpack.c.l.b16 %v611
        %v620 = vunpack.c.l.b16 %v612
        %v621 = vpack.c.b16 %v618, %v617
        %v622 = vpack.c.b16 %v620, %v619
        %v626 = vsel %vm579, %v608, 0
        %628 = vmatprep.subr.bf16.mxu0 0
        %629 = vmatpush1.bf16.msra.mxu0 %v621
        %630 = vmatprep.subr.bf16.mxu0 0
        %631 = vmatpush1.bf16.msra.mxu0 %v622
        %632 = vmatprep.subr.bf16.mxu0 0
        %633 = vmatpush1.bf16.msra.mxu0 0
        %634 = vmatprep.subr.bf16.mxu0 0
        %635 = vmatpush1.bf16.msra.mxu0 0
        %636 = vmatprep.subr.bf16.mxu0 0
        %637 = vmatpush1.bf16.msra.mxu0 0
        %638 = vmatprep.subr.bf16.mxu0 0
        %639 = vmatpush1.bf16.msra.mxu0 0
        %640 = vmatprep.subr.bf16.mxu0 0
        %641 = vmatpush1.bf16.msra.mxu0 0
        %642 = vmatprep.subr.bf16.mxu0 0
        %643 = vmatpush1.bf16.msra.mxu0 0
        %644 = vmatprep.subr.bf16.mxu0 0
        %645 = vmatpush1.bf16.msra.mxu0 0
        %646 = vmatprep.subr.bf16.mxu0 0
        %647 = vmatpush1.bf16.msra.mxu0 0
        %648 = vmatprep.subr.bf16.mxu0 0
        %649 = vmatpush1.bf16.msra.mxu0 0
        %650 = vmatprep.subr.bf16.mxu0 0
        %651 = vmatpush1.bf16.msra.mxu0 0
        %652 = vmatprep.subr.bf16.mxu0 0
        %653 = vmatpush1.bf16.msra.mxu0 0
        %654 = vmatprep.subr.bf16.mxu0 0
        %655 = vmatpush1.bf16.msra.mxu0 0
        %656 = vmatprep.subr.bf16.mxu0 0
        %657 = vmatpush1.bf16.msra.mxu0 0
        %658 = vmatprep.subr.bf16.mxu0 0
        %659 = vmatpush1.bf16.msra.mxu0 0
        %660 = vmatprep.mubr.bf16.mxu0 0
        %661 = vmatmul.mubr.bf16.gmra.mrb[0].mxu0 %v626
        %v662 = vpop.f32.mrb[0].mxu0
        %v663 = vadd.f32 0.0, %v662
        %v664 = vpop.f32.mrb[0].mxu0
        %v665 = vpop.f32.mrb[0].mxu0
        %v666 = vpop.f32.mrb[0].mxu0
        %667 = vdwg.mxu0
        %669 = vrot.lane.b32.xlu0 %v663, 120
        %v670 = vpop.permute.xlu0 %669
        %672 = vrot.lane.b32.xlu0 %v663, 112
        %v673 = vpop.permute.xlu0 %672
        %675 = vrot.lane.b32.xlu0 %v663, 104
        %v676 = vpop.permute.xlu0 %675
        %v678 = vcombine.low %v663, %v673
        %v679 = vcombine.high %v663, %v673
        %v681 = vunpack.c.l.s4 1983009808
        %v682 = vunpack.c.0.s8 %v681
        %v683 = vlaneseq
        %v684 = vshrl.u32 %v683, 7
        %v685 = vsub.s32 %v682, %v684
        %v686 = vrot.slane %v678, %v685
        %v688 = vunpack.c.l.s4 1983009808
        %v689 = vunpack.c.0.s8 %v688
        %v690 = vlaneseq
        %v691 = vshrl.u32 %v690, 7
        %v692 = vsub.s32 %v689, %v691
        %v693 = vrot.slane %v679, %v692
        %v694 = vcombine.low %v670, %v676
        %v695 = vcombine.high %v670, %v676
        %v697 = vunpack.c.l.s4 1983009808
        %v698 = vunpack.c.0.s8 %v697
        %v699 = vlaneseq
        %v700 = vshrl.u32 %v699, 7
        %v701 = vsub.s32 %v698, %v700
        %v702 = vrot.slane %v694, %v701
        %v704 = vunpack.c.l.s4 1983009808
        %v705 = vunpack.c.0.s8 %v704
        %v706 = vlaneseq
        %v707 = vshrl.u32 %v706, 7
        %v708 = vsub.s32 %v705, %v707
        %v709 = vrot.slane %v695, %v708
        %v710 = vcombine.low %v686, %v702
        %v711 = vcombine.high %v686, %v702
        %v713 = vunpack.c.l.s4 1934713408
        %v714 = vunpack.c.0.s8 %v713
        %v715 = vlaneseq
        %v716 = vshrl.u32 %v715, 7
        %v717 = vsub.s32 %v714, %v716
        %v718 = vrot.slane %v710, %v717
        %v720 = vunpack.c.l.s4 1934713408
        %v721 = vunpack.c.0.s8 %v720
        %v722 = vlaneseq
        %v723 = vshrl.u32 %v722, 7
        %v724 = vsub.s32 %v721, %v723
        %v725 = vrot.slane %v711, %v724
        %v726 = vcombine.low %v693, %v709
        %v727 = vcombine.high %v693, %v709
        %v729 = vunpack.c.l.s4 1934713408
        %v730 = vunpack.c.0.s8 %v729
        %v731 = vlaneseq
        %v732 = vshrl.u32 %v731, 7
        %v733 = vsub.s32 %v730, %v732
        %v734 = vrot.slane %v726, %v733
        %v736 = vunpack.c.l.s4 1934713408
        %v737 = vunpack.c.0.s8 %v736
        %v738 = vlaneseq
        %v739 = vshrl.u32 %v738, 7
        %v740 = vsub.s32 %v737, %v739
        %v741 = vrot.slane %v727, %v740
        %v742 = vcombine.high %v718, 0.0
        %v743 = vcombine.high %v725, 0.0
        %v744 = vcombine.high %v734, 0.0
        %v745 = vcombine.high %v741, 0.0
        %v746 = vcombine.low %v718, %v725
        %v748 = vunpack.c.l.s4 1983009808
        %v749 = vunpack.c.0.s8 %v748
        %v750 = vlaneseq
        %v751 = vshrl.u32 %v750, 7
        %v752 = vsub.s32 %v749, %v751
        %v753 = vrot.slane %v746, %v752
        %v754 = vcombine.low %v742, %v743
        %v756 = vunpack.c.l.s4 1983009808
        %v757 = vunpack.c.0.s8 %v756
        %v758 = vlaneseq
        %v759 = vshrl.u32 %v758, 7
        %v760 = vsub.s32 %v757, %v759
        %v761 = vrot.slane %v754, %v760
        %v762 = vcombine.low %v734, %v741
        %v764 = vunpack.c.l.s4 1983009808
        %v765 = vunpack.c.0.s8 %v764
        %v766 = vlaneseq
        %v767 = vshrl.u32 %v766, 7
        %v768 = vsub.s32 %v765, %v767
        %v769 = vrot.slane %v762, %v768
        %v770 = vcombine.low %v744, %v745
        %v772 = vunpack.c.l.s4 1983009808
        %v773 = vunpack.c.0.s8 %v772
        %v774 = vlaneseq
        %v775 = vshrl.u32 %v774, 7
        %v776 = vsub.s32 %v773, %v775
        %v777 = vrot.slane %v770, %v776
        %v778 = vcombine.low %v753, %v761
        %v779 = vcombine.high %v753, %v761
        %v781 = vunpack.c.l.s4 1934713408
        %v782 = vunpack.c.0.s8 %v781
        %v783 = vlaneseq
        %v784 = vshrl.u32 %v783, 7
        %v785 = vsub.s32 %v782, %v784
        %v786 = vrot.slane %v778, %v785
        %v788 = vunpack.c.l.s4 1934713408
        %v789 = vunpack.c.0.s8 %v788
        %v790 = vlaneseq
        %v791 = vshrl.u32 %v790, 7
        %v792 = vsub.s32 %v789, %v791
        %v793 = vrot.slane %v779, %v792
        %v794 = vcombine.low %v769, %v777
        %v795 = vcombine.high %v769, %v777
        %v797 = vunpack.c.l.s4 1934713408
        %v798 = vunpack.c.0.s8 %v797
        %v799 = vlaneseq
        %v800 = vshrl.u32 %v799, 7
        %v801 = vsub.s32 %v798, %v800
        %v802 = vrot.slane %v794, %v801
        %v804 = vunpack.c.l.s4 1934713408
        %v805 = vunpack.c.0.s8 %v804
        %v806 = vlaneseq
        %v807 = vshrl.u32 %v806, 7
        %v808 = vsub.s32 %v805, %v807
        %v809 = vrot.slane %v795, %v808
        %v810 = vcombine.low %v786, %v802
        %v811 = vcombine.high %v786, %v802
        %v812 = vcombine.low %v793, %v809
        %v813 = vcombine.high %v793, %v809
        %v814 = vpack.c.bf16 %v810, %v810
        %v815 = vpack.c.bf16 %v811, %v811
        %v816 = vpack.c.bf16 %v812, %v812
        %v817 = vpack.c.bf16 %v813, %v813
        %818 = vrot.lane.b32.xlu0 %v663, 96
        %v819 = vpop.permute.xlu0 %818
        %820 = vrot.lane.b32.xlu0 %v670, 96
        %v821 = vpop.permute.xlu0 %820
        %822 = vrot.lane.b32.xlu0 %v673, 96
        %v823 = vpop.permute.xlu0 %822
        %824 = vrot.lane.b32.xlu0 %v676, 96
        %v825 = vpop.permute.xlu0 %824
        %v830 = vcombine.low %v819, %v823
        %v831 = vcombine.high %v819, %v823
        %v833 = vunpack.c.l.s4 1983009808
        %v834 = vunpack.c.0.s8 %v833
        %v835 = vlaneseq
        %v836 = vshrl.u32 %v835, 7
        %v837 = vsub.s32 %v834, %v836
        %v838 = vrot.slane %v830, %v837
        %v840 = vunpack.c.l.s4 1983009808
        %v841 = vunpack.c.0.s8 %v840
        %v842 = vlaneseq
        %v843 = vshrl.u32 %v842, 7
        %v844 = vsub.s32 %v841, %v843
        %v845 = vrot.slane %v831, %v844
        %v846 = vcombine.low %v821, %v825
        %v847 = vcombine.high %v821, %v825
        %v849 = vunpack.c.l.s4 1983009808
        %v850 = vunpack.c.0.s8 %v849
        %v851 = vlaneseq
        %v852 = vshrl.u32 %v851, 7
        %v853 = vsub.s32 %v850, %v852
        %v854 = vrot.slane %v846, %v853
        %v856 = vunpack.c.l.s4 1983009808
        %v857 = vunpack.c.0.s8 %v856
        %v858 = vlaneseq
        %v859 = vshrl.u32 %v858, 7
        %v860 = vsub.s32 %v857, %v859
        %v861 = vrot.slane %v847, %v860
        %v862 = vcombine.low %v838, %v854
        %v863 = vcombine.high %v838, %v854
        %v865 = vunpack.c.l.s4 1934713408
        %v866 = vunpack.c.0.s8 %v865
        %v867 = vlaneseq
        %v868 = vshrl.u32 %v867, 7
        %v869 = vsub.s32 %v866, %v868
        %v870 = vrot.slane %v862, %v869
        %v872 = vunpack.c.l.s4 1934713408
        %v873 = vunpack.c.0.s8 %v872
        %v874 = vlaneseq
        %v875 = vshrl.u32 %v874, 7
        %v876 = vsub.s32 %v873, %v875
        %v877 = vrot.slane %v863, %v876
        %v878 = vcombine.low %v845, %v861
        %v879 = vcombine.high %v845, %v861
        %v881 = vunpack.c.l.s4 1934713408
        %v882 = vunpack.c.0.s8 %v881
        %v883 = vlaneseq
        %v884 = vshrl.u32 %v883, 7
        %v885 = vsub.s32 %v882, %v884
        %v886 = vrot.slane %v878, %v885
        %v888 = vunpack.c.l.s4 1934713408
        %v889 = vunpack.c.0.s8 %v888
        %v890 = vlaneseq
        %v891 = vshrl.u32 %v890, 7
        %v892 = vsub.s32 %v889, %v891
        %v893 = vrot.slane %v879, %v892
        %v894 = vcombine.high %v870, 0.0
        %v895 = vcombine.high %v877, 0.0
        %v896 = vcombine.high %v886, 0.0
        %v897 = vcombine.high %v893, 0.0
        %v898 = vcombine.low %v870, %v877
        %v900 = vunpack.c.l.s4 1983009808
        %v901 = vunpack.c.0.s8 %v900
        %v902 = vlaneseq
        %v903 = vshrl.u32 %v902, 7
        %v904 = vsub.s32 %v901, %v903
        %v905 = vrot.slane %v898, %v904
        %v906 = vcombine.low %v894, %v895
        %v908 = vunpack.c.l.s4 1983009808
        %v909 = vunpack.c.0.s8 %v908
        %v910 = vlaneseq
        %v911 = vshrl.u32 %v910, 7
        %v912 = vsub.s32 %v909, %v911
        %v913 = vrot.slane %v906, %v912
        %v914 = vcombine.low %v886, %v893
        %v916 = vunpack.c.l.s4 1983009808
        %v917 = vunpack.c.0.s8 %v916
        %v918 = vlaneseq
        %v919 = vshrl.u32 %v918, 7
        %v920 = vsub.s32 %v917, %v919
        %v921 = vrot.slane %v914, %v920
        %v922 = vcombine.low %v896, %v897
        %v924 = vunpack.c.l.s4 1983009808
        %v925 = vunpack.c.0.s8 %v924
        %v926 = vlaneseq
        %v927 = vshrl.u32 %v926, 7
        %v928 = vsub.s32 %v925, %v927
        %v929 = vrot.slane %v922, %v928
        %v930 = vcombine.low %v905, %v913
        %v931 = vcombine.high %v905, %v913
        %v933 = vunpack.c.l.s4 1934713408
        %v934 = vunpack.c.0.s8 %v933
        %v935 = vlaneseq
        %v936 = vshrl.u32 %v935, 7
        %v937 = vsub.s32 %v934, %v936
        %v938 = vrot.slane %v930, %v937
        %v940 = vunpack.c.l.s4 1934713408
        %v941 = vunpack.c.0.s8 %v940
        %v942 = vlaneseq
        %v943 = vshrl.u32 %v942, 7
        %v944 = vsub.s32 %v941, %v943
        %v945 = vrot.slane %v931, %v944
        %v946 = vcombine.low %v921, %v929
        %v947 = vcombine.high %v921, %v929
        %v949 = vunpack.c.l.s4 1934713408
        %v950 = vunpack.c.0.s8 %v949
        %v951 = vlaneseq
        %v952 = vshrl.u32 %v951, 7
        %v953 = vsub.s32 %v950, %v952
        %v954 = vrot.slane %v946, %v953
        %v956 = vunpack.c.l.s4 1934713408
        %v957 = vunpack.c.0.s8 %v956
        %v958 = vlaneseq
        %v959 = vshrl.u32 %v958, 7
        %v960 = vsub.s32 %v957, %v959
        %v961 = vrot.slane %v947, %v960
        %v962 = vcombine.low %v938, %v954
        %v963 = vcombine.high %v938, %v954
        %v964 = vcombine.low %v945, %v961
        %v965 = vcombine.high %v945, %v961
        %v966 = vpack.c.bf16 %v962, %v962
        %v967 = vpack.c.bf16 %v963, %v963
        %v968 = vpack.c.bf16 %v964, %v964
        %v969 = vpack.c.bf16 %v965, %v965
        %970 = vrot.lane.b32.xlu0 %v663, 64
        %v971 = vpop.permute.xlu0 %970
        %972 = vrot.lane.b32.xlu0 %v670, 64
        %v973 = vpop.permute.xlu0 %972
        %974 = vrot.lane.b32.xlu0 %v673, 64
        %v975 = vpop.permute.xlu0 %974
        %976 = vrot.lane.b32.xlu0 %v676, 64
        %v977 = vpop.permute.xlu0 %976
        %v982 = vcombine.low %v971, %v975
        %v983 = vcombine.high %v971, %v975
        %v985 = vunpack.c.l.s4 1983009808
        %v986 = vunpack.c.0.s8 %v985
        %v987 = vlaneseq
        %v988 = vshrl.u32 %v987, 7
        %v989 = vsub.s32 %v986, %v988
        %v990 = vrot.slane %v982, %v989
        %v992 = vunpack.c.l.s4 1983009808
        %v993 = vunpack.c.0.s8 %v992
        %v994 = vlaneseq
        %v995 = vshrl.u32 %v994, 7
        %v996 = vsub.s32 %v993, %v995
        %v997 = vrot.slane %v983, %v996
        %v998 = vcombine.low %v973, %v977
        %v999 = vcombine.high %v973, %v977
        %v1001 = vunpack.c.l.s4 1983009808
        %v1002 = vunpack.c.0.s8 %v1001
        %v1003 = vlaneseq
        %v1004 = vshrl.u32 %v1003, 7
        %v1005 = vsub.s32 %v1002, %v1004
        %v1006 = vrot.slane %v998, %v1005
        %v1008 = vunpack.c.l.s4 1983009808
        %v1009 = vunpack.c.0.s8 %v1008
        %v1010 = vlaneseq
        %v1011 = vshrl.u32 %v1010, 7
        %v1012 = vsub.s32 %v1009, %v1011
        %v1013 = vrot.slane %v999, %v1012
        %v1014 = vcombine.low %v990, %v1006
        %v1015 = vcombine.high %v990, %v1006
        %v1017 = vunpack.c.l.s4 1934713408
        %v1018 = vunpack.c.0.s8 %v1017
        %v1019 = vlaneseq
        %v1020 = vshrl.u32 %v1019, 7
        %v1021 = vsub.s32 %v1018, %v1020
        %v1022 = vrot.slane %v1014, %v1021
        %v1024 = vunpack.c.l.s4 1934713408
        %v1025 = vunpack.c.0.s8 %v1024
        %v1026 = vlaneseq
        %v1027 = vshrl.u32 %v1026, 7
        %v1028 = vsub.s32 %v1025, %v1027
        %v1029 = vrot.slane %v1015, %v1028
        %v1030 = vcombine.low %v997, %v1013
        %v1031 = vcombine.high %v997, %v1013
        %v1033 = vunpack.c.l.s4 1934713408
        %v1034 = vunpack.c.0.s8 %v1033
        %v1035 = vlaneseq
        %v1036 = vshrl.u32 %v1035, 7
        %v1037 = vsub.s32 %v1034, %v1036
        %v1038 = vrot.slane %v1030, %v1037
        %v1040 = vunpack.c.l.s4 1934713408
        %v1041 = vunpack.c.0.s8 %v1040
        %v1042 = vlaneseq
        %v1043 = vshrl.u32 %v1042, 7
        %v1044 = vsub.s32 %v1041, %v1043
        %v1045 = vrot.slane %v1031, %v1044
        %v1046 = vcombine.high %v1022, 0.0
        %v1047 = vcombine.high %v1029, 0.0
        %v1048 = vcombine.high %v1038, 0.0
        %v1049 = vcombine.high %v1045, 0.0
        %v1050 = vcombine.low %v1022, %v1029
        %v1052 = vunpack.c.l.s4 1983009808
        %v1053 = vunpack.c.0.s8 %v1052
        %v1054 = vlaneseq
        %v1055 = vshrl.u32 %v1054, 7
        %v1056 = vsub.s32 %v1053, %v1055
        %v1057 = vrot.slane %v1050, %v1056
        %v1058 = vcombine.low %v1046, %v1047
        %v1060 = vunpack.c.l.s4 1983009808
        %v1061 = vunpack.c.0.s8 %v1060
        %v1062 = vlaneseq
        %v1063 = vshrl.u32 %v1062, 7
        %v1064 = vsub.s32 %v1061, %v1063
        %v1065 = vrot.slane %v1058, %v1064
        %v1066 = vcombine.low %v1038, %v1045
        %v1068 = vunpack.c.l.s4 1983009808
        %v1069 = vunpack.c.0.s8 %v1068
        %v1070 = vlaneseq
        %v1071 = vshrl.u32 %v1070, 7
        %v1072 = vsub.s32 %v1069, %v1071
        %v1073 = vrot.slane %v1066, %v1072
        %v1074 = vcombine.low %v1048, %v1049
        %v1076 = vunpack.c.l.s4 1983009808
        %v1077 = vunpack.c.0.s8 %v1076
        %v1078 = vlaneseq
        %v1079 = vshrl.u32 %v1078, 7
        %v1080 = vsub.s32 %v1077, %v1079
        %v1081 = vrot.slane %v1074, %v1080
        %v1082 = vcombine.low %v1057, %v1065
        %v1083 = vcombine.high %v1057, %v1065
        %v1085 = vunpack.c.l.s4 1934713408
        %v1086 = vunpack.c.0.s8 %v1085
        %v1087 = vlaneseq
        %v1088 = vshrl.u32 %v1087, 7
        %v1089 = vsub.s32 %v1086, %v1088
        %v1090 = vrot.slane %v1082, %v1089
        %v1092 = vunpack.c.l.s4 1934713408
        %v1093 = vunpack.c.0.s8 %v1092
        %v1094 = vlaneseq
        %v1095 = vshrl.u32 %v1094, 7
        %v1096 = vsub.s32 %v1093, %v1095
        %v1097 = vrot.slane %v1083, %v1096
        %v1098 = vcombine.low %v1073, %v1081
        %v1099 = vcombine.high %v1073, %v1081
        %v1101 = vunpack.c.l.s4 1934713408
        %v1102 = vunpack.c.0.s8 %v1101
        %v1103 = vlaneseq
        %v1104 = vshrl.u32 %v1103, 7
        %v1105 = vsub.s32 %v1102, %v1104
        %v1106 = vrot.slane %v1098, %v1105
        %v1108 = vunpack.c.l.s4 1934713408
        %v1109 = vunpack.c.0.s8 %v1108
        %v1110 = vlaneseq
        %v1111 = vshrl.u32 %v1110, 7
        %v1112 = vsub.s32 %v1109, %v1111
        %v1113 = vrot.slane %v1099, %v1112
        %v1114 = vcombine.low %v1090, %v1106
        %v1115 = vcombine.high %v1090, %v1106
        %v1116 = vcombine.low %v1097, %v1113
        %v1117 = vcombine.high %v1097, %v1113
        %v1118 = vpack.c.bf16 %v1114, %v1114
        %v1119 = vpack.c.bf16 %v1115, %v1115
        %v1120 = vpack.c.bf16 %v1116, %v1116
        %v1121 = vpack.c.bf16 %v1117, %v1117
        %vm1122 = vcmask 64512
        %v1124 = vsel %vm1122, %v814, 0
        %v1127 = vsel %vm1122, %v966, 0
        %1129 = vmatprep.subr.bf16.mxu0 0
        %1130 = vmatpush1.bf16.xpose.msra.mxu0 %v1127
        %1131 = vmatprep.subr.bf16.mxu0 0
        %1132 = vmatpush1.bf16.xpose.msra.mxu0 0
        %1133 = vmatprep.subr.bf16.mxu0 0
        %1134 = vmatpush1.bf16.xpose.msra.mxu0 0
        %1135 = vmatprep.subr.bf16.mxu0 0
        %1136 = vmatpush1.bf16.xpose.msra.mxu0 0
        %1137 = vmatprep.subr.bf16.mxu0 0
        %1138 = vmatpush1.bf16.xpose.msra.mxu0 0
        %1139 = vmatprep.subr.bf16.mxu0 0
        %1140 = vmatpush1.bf16.xpose.msra.mxu0 0
        %1141 = vmatprep.subr.bf16.mxu0 0
        %1142 = vmatpush1.bf16.xpose.msra.mxu0 0
        %1143 = vmatprep.subr.bf16.mxu0 0
        %1144 = vmatpush1.bf16.xpose.msra.mxu0 0
        %1145 = vmatprep.subr.bf16.mxu0 0
        %1146 = vmatpush1.bf16.xpose.msra.mxu0 0
        %1147 = vmatprep.subr.bf16.mxu0 0
        %1148 = vmatpush1.bf16.xpose.msra.mxu0 0
        %1149 = vmatprep.subr.bf16.mxu0 0
        %1150 = vmatpush1.bf16.xpose.msra.mxu0 0
        %1151 = vmatprep.subr.bf16.mxu0 0
        %1152 = vmatpush1.bf16.xpose.msra.mxu0 0
        %1153 = vmatprep.subr.bf16.mxu0 0
        %1154 = vmatpush1.bf16.xpose.msra.mxu0 0
        %1155 = vmatprep.subr.bf16.mxu0 0
        %1156 = vmatpush1.bf16.xpose.msra.mxu0 0
        %1157 = vmatprep.subr.bf16.mxu0 0
        %1158 = vmatpush1.bf16.xpose.msra.mxu0 0
        %1159 = vmatprep.subr.bf16.mxu0 0
        %1160 = vmatpush1.bf16.xpose.msra.mxu0 0
        %1161 = vmatprep.mubr.bf16.mxu0 0
        %1162 = vmatmul.mubr.bf16.gmra.mrb[0].mxu0 %v1124
        %v1163 = vpop.f32.mrb[0].mxu0
        %v1164 = vadd.f32 0.0, %v1163
        %v1165 = vpop.f32.mrb[0].mxu0
        %v1166 = vpop.f32.mrb[0].mxu0
        %v1167 = vpop.f32.mrb[0].mxu0
        %1168 = vdwg.mxu0
        %v1170 = vsel %vm1122, %v815, 0
        %v1173 = vsel %vm1122, %v967, 0
        %1175 = vmatprep.subr.bf16.mxu0 0
        %1176 = vmatpush1.bf16.xpose.msra.mxu0 %v1173
        %1177 = vmatprep.subr.bf16.mxu0 0
        %1178 = vmatpush1.bf16.xpose.msra.mxu0 0
        %1179 = vmatprep.subr.bf16.mxu0 0
        %1180 = vmatpush1.bf16.xpose.msra.mxu0 0
        %1181 = vmatprep.subr.bf16.mxu0 0
        %1182 = vmatpush1.bf16.xpose.msra.mxu0 0
        %1183 = vmatprep.subr.bf16.mxu0 0
        %1184 = vmatpush1.bf16.xpose.msra.mxu0 0
        %1185 = vmatprep.subr.bf16.mxu0 0
        %1186 = vmatpush1.bf16.xpose.msra.mxu0 0
        %1187 = vmatprep.subr.bf16.mxu0 0
        %1188 = vmatpush1.bf16.xpose.msra.mxu0 0
        %1189 = vmatprep.subr.bf16.mxu0 0
        %1190 = vmatpush1.bf16.xpose.msra.mxu0 0
        %1191 = vmatprep.subr.bf16.mxu0 0
        %1192 = vmatpush1.bf16.xpose.msra.mxu0 0
        %1193 = vmatprep.subr.bf16.mxu0 0
        %1194 = vmatpush1.bf16.xpose.msra.mxu0 0
        %1195 = vmatprep.subr.bf16.mxu0 0
        %1196 = vmatpush1.bf16.xpose.msra.mxu0 0
        %1197 = vmatprep.subr.bf16.mxu0 0
        %1198 = vmatpush1.bf16.xpose.msra.mxu0 0
        %1199 = vmatprep.subr.bf16.mxu0 0
        %1200 = vmatpush1.bf16.xpose.msra.mxu0 0
        %1201 = vmatprep.subr.bf16.mxu0 0
        %1202 = vmatpush1.bf16.xpose.msra.mxu0 0
        %1203 = vmatprep.subr.bf16.mxu0 0
        %1204 = vmatpush1.bf16.xpose.msra.mxu0 0
        %1205 = vmatprep.subr.bf16.mxu0 0
        %1206 = vmatpush1.bf16.xpose.msra.mxu0 0
        %1207 = vmatprep.mubr.bf16.mxu0 0
        %1208 = vmatmul.mubr.bf16.gmra.mrb[0].mxu0 %v1170
        %v1209 = vpop.f32.mrb[0].mxu0
        %v1210 = vadd.f32 0.0, %v1209
        %v1211 = vpop.f32.mrb[0].mxu0
        %v1212 = vpop.f32.mrb[0].mxu0
        %v1213 = vpop.f32.mrb[0].mxu0
        %1214 = vdwg.mxu0
        %v1216 = vsel %vm1122, %v816, 0
        %v1219 = vsel %vm1122, %v968, 0
        %1221 = vmatprep.subr.bf16.mxu0 0
        %1222 = vmatpush1.bf16.xpose.msra.mxu0 %v1219
        %1223 = vmatprep.subr.bf16.mxu0 0
        %1224 = vmatpush1.bf16.xpose.msra.mxu0 0
        %1225 = vmatprep.subr.bf16.mxu0 0
        %1226 = vmatpush1.bf16.xpose.msra.mxu0 0
        %1227 = vmatprep.subr.bf16.mxu0 0
        %1228 = vmatpush1.bf16.xpose.msra.mxu0 0
        %1229 = vmatprep.subr.bf16.mxu0 0
        %1230 = vmatpush1.bf16.xpose.msra.mxu0 0
        %1231 = vmatprep.subr.bf16.mxu0 0
        %1232 = vmatpush1.bf16.xpose.msra.mxu0 0
        %1233 = vmatprep.subr.bf16.mxu0 0
        %1234 = vmatpush1.bf16.xpose.msra.mxu0 0
        %1235 = vmatprep.subr.bf16.mxu0 0
        %1236 = vmatpush1.bf16.xpose.msra.mxu0 0
        %1237 = vmatprep.subr.bf16.mxu0 0
        %1238 = vmatpush1.bf16.xpose.msra.mxu0 0
        %1239 = vmatprep.subr.bf16.mxu0 0
        %1240 = vmatpush1.bf16.xpose.msra.mxu0 0
        %1241 = vmatprep.subr.bf16.mxu0 0
        %1242 = vmatpush1.bf16.xpose.msra.mxu0 0
        %1243 = vmatprep.subr.bf16.mxu0 0
        %1244 = vmatpush1.bf16.xpose.msra.mxu0 0
        %1245 = vmatprep.subr.bf16.mxu0 0
        %1246 = vmatpush1.bf16.xpose.msra.mxu0 0
        %1247 = vmatprep.subr.bf16.mxu0 0
        %1248 = vmatpush1.bf16.xpose.msra.mxu0 0
        %1249 = vmatprep.subr.bf16.mxu0 0
        %1250 = vmatpush1.bf16.xpose.msra.mxu0 0
        %1251 = vmatprep.subr.bf16.mxu0 0
        %1252 = vmatpush1.bf16.xpose.msra.mxu0 0
        %1253 = vmatprep.mubr.bf16.mxu0 0
        %1254 = vmatmul.mubr.bf16.gmra.mrb[0].mxu0 %v1216
        %v1255 = vpop.f32.mrb[0].mxu0
        %v1256 = vadd.f32 0.0, %v1255
        %v1257 = vpop.f32.mrb[0].mxu0
        %v1258 = vpop.f32.mrb[0].mxu0
        %v1259 = vpop.f32.mrb[0].mxu0
        %1260 = vdwg.mxu0
        %v1262 = vsel %vm1122, %v817, 0
        %v1265 = vsel %vm1122, %v969, 0
        %1267 = vmatprep.subr.bf16.mxu0 0
        %1268 = vmatpush1.bf16.xpose.msra.mxu0 %v1265
        %1269 = vmatprep.subr.bf16.mxu0 0
        %1270 = vmatpush1.bf16.xpose.msra.mxu0 0
        %1271 = vmatprep.subr.bf16.mxu0 0
        %1272 = vmatpush1.bf16.xpose.msra.mxu0 0
        %1273 = vmatprep.subr.bf16.mxu0 0
        %1274 = vmatpush1.bf16.xpose.msra.mxu0 0
        %1275 = vmatprep.subr.bf16.mxu0 0
        %1276 = vmatpush1.bf16.xpose.msra.mxu0 0
        %1277 = vmatprep.subr.bf16.mxu0 0
        %1278 = vmatpush1.bf16.xpose.msra.mxu0 0
        %1279 = vmatprep.subr.bf16.mxu0 0
        %1280 = vmatpush1.bf16.xpose.msra.mxu0 0
        %1281 = vmatprep.subr.bf16.mxu0 0
        %1282 = vmatpush1.bf16.xpose.msra.mxu0 0
        %1283 = vmatprep.subr.bf16.mxu0 0
        %1284 = vmatpush1.bf16.xpose.msra.mxu0 0
        %1285 = vmatprep.subr.bf16.mxu0 0
        %1286 = vmatpush1.bf16.xpose.msra.mxu0 0
        %1287 = vmatprep.subr.bf16.mxu0 0
        %1288 = vmatpush1.bf16.xpose.msra.mxu0 0
        %1289 = vmatprep.subr.bf16.mxu0 0
        %1290 = vmatpush1.bf16.xpose.msra.mxu0 0
        %1291 = vmatprep.subr.bf16.mxu0 0
        %1292 = vmatpush1.bf16.xpose.msra.mxu0 0
        %1293 = vmatprep.subr.bf16.mxu0 0
        %1294 = vmatpush1.bf16.xpose.msra.mxu0 0
        %1295 = vmatprep.subr.bf16.mxu0 0
        %1296 = vmatpush1.bf16.xpose.msra.mxu0 0
        %1297 = vmatprep.subr.bf16.mxu0 0
        %1298 = vmatpush1.bf16.xpose.msra.mxu0 0
        %1299 = vmatprep.mubr.bf16.mxu0 0
        %1300 = vmatmul.mubr.bf16.gmra.mrb[0].mxu0 %v1262
        %v1301 = vpop.f32.mrb[0].mxu0
        %v1302 = vadd.f32 0.0, %v1301
        %v1303 = vpop.f32.mrb[0].mxu0
        %v1304 = vpop.f32.mrb[0].mxu0
        %v1305 = vpop.f32.mrb[0].mxu0
        %1306 = vdwg.mxu0
        %v1307 = vsel %vm1122, %v1164, -inf
        %1308 = vmax.xlane.f32.xlu0 %v1307
        %v1309 = vpop.xlane.xlu0 %1308
        %v1310 = vsel %vm1122, %v1210, -inf
        %1311 = vmax.xlane.f32.xlu0 %v1310
        %v1312 = vpop.xlane.xlu0 %1311
        %v1313 = vsel %vm1122, %v1256, -inf
        %1314 = vmax.xlane.f32.xlu0 %v1313
        %v1315 = vpop.xlane.xlu0 %1314
        %v1316 = vsel %vm1122, %v1302, -inf
        %1317 = vmax.xlane.f32.xlu0 %v1316
        %v1318 = vpop.xlane.xlu0 %1317
        %v1319 = vsub.f32 %v1164, %v1309
        %v1320 = vsub.f32 %v1210, %v1312
        %v1321 = vsub.f32 %v1256, %v1315
        %v1322 = vsub.f32 %v1302, %v1318
        %v1323 = vmul.f32 %v1319, 1.442695
        %v1324 = vpow.pop %v1323
        %v1325 = vmul.f32 %v1320, 1.442695
        %v1326 = vpow.pop %v1325
        %v1327 = vmul.f32 %v1321, 1.442695
        %v1328 = vpow.pop %v1327
        %v1329 = vmul.f32 %v1322, 1.442695
        %v1330 = vpow.pop %v1329
        %v1331 = vsel %vm1122, %v1324, 0.0
        %1332 = vadd.xlane.f32.xlu0 %v1331
        %v1333 = vpop.xlane.xlu0 %1332
        %v1334 = vsel %vm1122, %v1326, 0.0
        %1335 = vadd.xlane.f32.xlu0 %v1334
        %v1336 = vpop.xlane.xlu0 %1335
        %v1337 = vsel %vm1122, %v1328, 0.0
        %1338 = vadd.xlane.f32.xlu0 %v1337
        %v1339 = vpop.xlane.xlu0 %1338
        %v1340 = vsel %vm1122, %v1330, 0.0
        %1341 = vadd.xlane.f32.xlu0 %v1340
        %v1342 = vpop.xlane.xlu0 %1341
        %v1343 = vrcp.pop %v1333
        %v1344 = vrcp.pop %v1336
        %v1345 = vrcp.pop %v1339
        %v1346 = vrcp.pop %v1342
        %v1347 = vmul.f32 %v1324, %v1343
        %v1348 = vmul.f32 %v1326, %v1344
        %v1349 = vmul.f32 %v1328, %v1345
        %v1350 = vmul.f32 %v1330, %v1346
        %v1351 = vpack.c.bf16 %v1347, %v1347
        %v1352 = vpack.c.bf16 %v1348, %v1348
        %v1353 = vpack.c.bf16 %v1349, %v1349
        %v1354 = vpack.c.bf16 %v1350, %v1350
        %v1356 = vsel %vm1122, %v1351, 0
        %vm1358 = vcmask 1043456
        %v1360 = vsel %vm1358, %v1118, 0
        %1362 = vmatprep.subr.bf16.mxu0 0
        %1363 = vmatpush1.bf16.msra.mxu0 %v1360
        %1364 = vmatprep.subr.bf16.mxu0 0
        %1365 = vmatpush1.bf16.msra.mxu0 0
        %1366 = vmatprep.subr.bf16.mxu0 0
        %1367 = vmatpush1.bf16.msra.mxu0 0
        %1368 = vmatprep.subr.bf16.mxu0 0
        %1369 = vmatpush1.bf16.msra.mxu0 0
        %1370 = vmatprep.subr.bf16.mxu0 0
        %1371 = vmatpush1.bf16.msra.mxu0 0
        %1372 = vmatprep.subr.bf16.mxu0 0
        %1373 = vmatpush1.bf16.msra.mxu0 0
        %1374 = vmatprep.subr.bf16.mxu0 0
        %1375 = vmatpush1.bf16.msra.mxu0 0
        %1376 = vmatprep.subr.bf16.mxu0 0
        %1377 = vmatpush1.bf16.msra.mxu0 0
        %1378 = vmatprep.subr.bf16.mxu0 0
        %1379 = vmatpush1.bf16.msra.mxu0 0
        %1380 = vmatprep.subr.bf16.mxu0 0
        %1381 = vmatpush1.bf16.msra.mxu0 0
        %1382 = vmatprep.subr.bf16.mxu0 0
        %1383 = vmatpush1.bf16.msra.mxu0 0
        %1384 = vmatprep.subr.bf16.mxu0 0
        %1385 = vmatpush1.bf16.msra.mxu0 0
        %1386 = vmatprep.subr.bf16.mxu0 0
        %1387 = vmatpush1.bf16.msra.mxu0 0
        %1388 = vmatprep.subr.bf16.mxu0 0
        %1389 = vmatpush1.bf16.msra.mxu0 0
        %1390 = vmatprep.subr.bf16.mxu0 0
        %1391 = vmatpush1.bf16.msra.mxu0 0
        %1392 = vmatprep.subr.bf16.mxu0 0
        %1393 = vmatpush1.bf16.msra.mxu0 0
        %1394 = vmatprep.mubr.bf16.mxu0 0
        %1395 = vmatmul.mubr.bf16.gmra.mrb[0].mxu0 %v1356
        %v1396 = vpop.f32.mrb[0].mxu0
        %v1397 = vadd.f32 0.0, %v1396
        %v1398 = vpop.f32.mrb[0].mxu0
        %v1399 = vpop.f32.mrb[0].mxu0
        %v1400 = vpop.f32.mrb[0].mxu0
        %1401 = vdwg.mxu0
        %v1403 = vsel %vm1122, %v1352, 0
        %v1406 = vsel %vm1358, %v1119, 0
        %1408 = vmatprep.subr.bf16.mxu0 0
        %1409 = vmatpush1.bf16.msra.mxu0 %v1406
        %1410 = vmatprep.subr.bf16.mxu0 0
        %1411 = vmatpush1.bf16.msra.mxu0 0
        %1412 = vmatprep.subr.bf16.mxu0 0
        %1413 = vmatpush1.bf16.msra.mxu0 0
        %1414 = vmatprep.subr.bf16.mxu0 0
        %1415 = vmatpush1.bf16.msra.mxu0 0
        %1416 = vmatprep.subr.bf16.mxu0 0
        %1417 = vmatpush1.bf16.msra.mxu0 0
        %1418 = vmatprep.subr.bf16.mxu0 0
        %1419 = vmatpush1.bf16.msra.mxu0 0
        %1420 = vmatprep.subr.bf16.mxu0 0
        %1421 = vmatpush1.bf16.msra.mxu0 0
        %1422 = vmatprep.subr.bf16.mxu0 0
        %1423 = vmatpush1.bf16.msra.mxu0 0
        %1424 = vmatprep.subr.bf16.mxu0 0
        %1425 = vmatpush1.bf16.msra.mxu0 0
        %1426 = vmatprep.subr.bf16.mxu0 0
        %1427 = vmatpush1.bf16.msra.mxu0 0
        %1428 = vmatprep.subr.bf16.mxu0 0
        %1429 = vmatpush1.bf16.msra.mxu0 0
        %1430 = vmatprep.subr.bf16.mxu0 0
        %1431 = vmatpush1.bf16.msra.mxu0 0
        %1432 = vmatprep.subr.bf16.mxu0 0
        %1433 = vmatpush1.bf16.msra.mxu0 0
        %1434 = vmatprep.subr.bf16.mxu0 0
        %1435 = vmatpush1.bf16.msra.mxu0 0
        %1436 = vmatprep.subr.bf16.mxu0 0
        %1437 = vmatpush1.bf16.msra.mxu0 0
        %1438 = vmatprep.subr.bf16.mxu0 0
        %1439 = vmatpush1.bf16.msra.mxu0 0
        %1440 = vmatprep.mubr.bf16.mxu0 0
        %1441 = vmatmul.mubr.bf16.gmra.mrb[0].mxu0 %v1403
        %v1442 = vpop.f32.mrb[0].mxu0
        %v1443 = vadd.f32 0.0, %v1442
        %v1444 = vpop.f32.mrb[0].mxu0
        %v1445 = vpop.f32.mrb[0].mxu0
        %v1446 = vpop.f32.mrb[0].mxu0
        %1447 = vdwg.mxu0
        %v1449 = vsel %vm1122, %v1353, 0
        %v1452 = vsel %vm1358, %v1120, 0
        %1454 = vmatprep.subr.bf16.mxu0 0
        %1455 = vmatpush1.bf16.msra.mxu0 %v1452
        %1456 = vmatprep.subr.bf16.mxu0 0
        %1457 = vmatpush1.bf16.msra.mxu0 0
        %1458 = vmatprep.subr.bf16.mxu0 0
        %1459 = vmatpush1.bf16.msra.mxu0 0
        %1460 = vmatprep.subr.bf16.mxu0 0
        %1461 = vmatpush1.bf16.msra.mxu0 0
        %1462 = vmatprep.subr.bf16.mxu0 0
        %1463 = vmatpush1.bf16.msra.mxu0 0
        %1464 = vmatprep.subr.bf16.mxu0 0
        %1465 = vmatpush1.bf16.msra.mxu0 0
        %1466 = vmatprep.subr.bf16.mxu0 0
        %1467 = vmatpush1.bf16.msra.mxu0 0
        %1468 = vmatprep.subr.bf16.mxu0 0
        %1469 = vmatpush1.bf16.msra.mxu0 0
        %1470 = vmatprep.subr.bf16.mxu0 0
        %1471 = vmatpush1.bf16.msra.mxu0 0
        %1472 = vmatprep.subr.bf16.mxu0 0
        %1473 = vmatpush1.bf16.msra.mxu0 0
        %1474 = vmatprep.subr.bf16.mxu0 0
        %1475 = vmatpush1.bf16.msra.mxu0 0
        %1476 = vmatprep.subr.bf16.mxu0 0
        %1477 = vmatpush1.bf16.msra.mxu0 0
        %1478 = vmatprep.subr.bf16.mxu0 0
        %1479 = vmatpush1.bf16.msra.mxu0 0
        %1480 = vmatprep.subr.bf16.mxu0 0
        %1481 = vmatpush1.bf16.msra.mxu0 0
        %1482 = vmatprep.subr.bf16.mxu0 0
        %1483 = vmatpush1.bf16.msra.mxu0 0
        %1484 = vmatprep.subr.bf16.mxu0 0
        %1485 = vmatpush1.bf16.msra.mxu0 0
        %1486 = vmatprep.mubr.bf16.mxu0 0
        %1487 = vmatmul.mubr.bf16.gmra.mrb[0].mxu0 %v1449
        %v1488 = vpop.f32.mrb[0].mxu0
        %v1489 = vadd.f32 0.0, %v1488
        %v1490 = vpop.f32.mrb[0].mxu0
        %v1491 = vpop.f32.mrb[0].mxu0
        %v1492 = vpop.f32.mrb[0].mxu0
        %1493 = vdwg.mxu0
        %v1495 = vsel %vm1122, %v1354, 0
        %v1498 = vsel %vm1358, %v1121, 0
        %1500 = vmatprep.subr.bf16.mxu0 0
        %1501 = vmatpush1.bf16.msra.mxu0 %v1498
        %1502 = vmatprep.subr.bf16.mxu0 0
        %1503 = vmatpush1.bf16.msra.mxu0 0
        %1504 = vmatprep.subr.bf16.mxu0 0
        %1505 = vmatpush1.bf16.msra.mxu0 0
        %1506 = vmatprep.subr.bf16.mxu0 0
        %1507 = vmatpush1.bf16.msra.mxu0 0
        %1508 = vmatprep.subr.bf16.mxu0 0
        %1509 = vmatpush1.bf16.msra.mxu0 0
        %1510 = vmatprep.subr.bf16.mxu0 0
        %1511 = vmatpush1.bf16.msra.mxu0 0
        %1512 = vmatprep.subr.bf16.mxu0 0
        %1513 = vmatpush1.bf16.msra.mxu0 0
        %1514 = vmatprep.subr.bf16.mxu0 0
        %1515 = vmatpush1.bf16.msra.mxu0 0
        %1516 = vmatprep.subr.bf16.mxu0 0
        %1517 = vmatpush1.bf16.msra.mxu0 0
        %1518 = vmatprep.subr.bf16.mxu0 0
        %1519 = vmatpush1.bf16.msra.mxu0 0
        %1520 = vmatprep.subr.bf16.mxu0 0
        %1521 = vmatpush1.bf16.msra.mxu0 0
        %1522 = vmatprep.subr.bf16.mxu0 0
        %1523 = vmatpush1.bf16.msra.mxu0 0
        %1524 = vmatprep.subr.bf16.mxu0 0
        %1525 = vmatpush1.bf16.msra.mxu0 0
        %1526 = vmatprep.subr.bf16.mxu0 0
        %1527 = vmatpush1.bf16.msra.mxu0 0
        %1528 = vmatprep.subr.bf16.mxu0 0
        %1529 = vmatpush1.bf16.msra.mxu0 0
        %1530 = vmatprep.subr.bf16.mxu0 0
        %1531 = vmatpush1.bf16.msra.mxu0 0
        %1532 = vmatprep.mubr.bf16.mxu0 0
        %1533 = vmatmul.mubr.bf16.gmra.mrb[0].mxu0 %v1495
        %v1534 = vpop.f32.mrb[0].mxu0
        %v1535 = vadd.f32 0.0, %v1534
        %v1536 = vpop.f32.mrb[0].mxu0
        %v1537 = vpop.f32.mrb[0].mxu0
        %v1538 = vpop.f32.mrb[0].mxu0
        %1539 = vdwg.mxu0
        %v1540 = vpack.c.bf16 %v1397, %v1397
        %v1541 = vpack.c.bf16 %v1443, %v1443
        %v1542 = vpack.c.bf16 %v1489, %v1489
        %v1543 = vpack.c.bf16 %v1535, %v1535
        %v1544 = vld [vmem:[#allocation10] sm:$0xf]
        %v1545 = vld [vmem:[#allocation10 + $0x4] sm:$0xf]
        %v1546 = vld [vmem:[#allocation10 + $0x8] sm:$0xf]
        %v1547 = vld [vmem:[#allocation10 + $0xc] sm:$0xf]
        %v1549 = vsel %vm1122, %v1540, 0
        %v1552 = vsel %vm1358, %v1544, 0
        %1554 = vmatprep.subr.bf16.mxu0 0
        %1555 = vmatpush1.bf16.msra.mxu0 %v1552
        %1556 = vmatprep.subr.bf16.mxu0 0
        %1557 = vmatpush1.bf16.msra.mxu0 0
        %1558 = vmatprep.subr.bf16.mxu0 0
        %1559 = vmatpush1.bf16.msra.mxu0 0
        %1560 = vmatprep.subr.bf16.mxu0 0
        %1561 = vmatpush1.bf16.msra.mxu0 0
        %1562 = vmatprep.subr.bf16.mxu0 0
        %1563 = vmatpush1.bf16.msra.mxu0 0
        %1564 = vmatprep.subr.bf16.mxu0 0
        %1565 = vmatpush1.bf16.msra.mxu0 0
        %1566 = vmatprep.subr.bf16.mxu0 0
        %1567 = vmatpush1.bf16.msra.mxu0 0
        %1568 = vmatprep.subr.bf16.mxu0 0
        %1569 = vmatpush1.bf16.msra.mxu0 0
        %1570 = vmatprep.subr.bf16.mxu0 0
        %1571 = vmatpush1.bf16.msra.mxu0 0
        %1572 = vmatprep.subr.bf16.mxu0 0
        %1573 = vmatpush1.bf16.msra.mxu0 0
        %1574 = vmatprep.subr.bf16.mxu0 0
        %1575 = vmatpush1.bf16.msra.mxu0 0
        %1576 = vmatprep.subr.bf16.mxu0 0
        %1577 = vmatpush1.bf16.msra.mxu0 0
        %1578 = vmatprep.subr.bf16.mxu0 0
        %1579 = vmatpush1.bf16.msra.mxu0 0
        %1580 = vmatprep.subr.bf16.mxu0 0
        %1581 = vmatpush1.bf16.msra.mxu0 0
        %1582 = vmatprep.subr.bf16.mxu0 0
        %1583 = vmatpush1.bf16.msra.mxu0 0
        %1584 = vmatprep.subr.bf16.mxu0 0
        %1585 = vmatpush1.bf16.msra.mxu0 0
        %1586 = vmatprep.mubr.bf16.mxu0 0
        %1587 = vmatmul.mubr.bf16.gmra.mrb[0].mxu0 %v1549
        %v1588 = vpop.f32.mrb[0].mxu0
        %v1589 = vadd.f32 0.0, %v1588
        %v1590 = vpop.f32.mrb[0].mxu0
        %v1591 = vpop.f32.mrb[0].mxu0
        %v1592 = vpop.f32.mrb[0].mxu0
        %1593 = vdwg.mxu0
        %v1595 = vsel %vm1122, %v1541, 0
        %v1598 = vsel %vm1358, %v1545, 0
        %1600 = vmatprep.subr.bf16.mxu0 0
        %1601 = vmatpush1.bf16.msra.mxu0 %v1598
        %1602 = vmatprep.subr.bf16.mxu0 0
        %1603 = vmatpush1.bf16.msra.mxu0 0
        %1604 = vmatprep.subr.bf16.mxu0 0
        %1605 = vmatpush1.bf16.msra.mxu0 0
        %1606 = vmatprep.subr.bf16.mxu0 0
        %1607 = vmatpush1.bf16.msra.mxu0 0
        %1608 = vmatprep.subr.bf16.mxu0 0
        %1609 = vmatpush1.bf16.msra.mxu0 0
        %1610 = vmatprep.subr.bf16.mxu0 0
        %1611 = vmatpush1.bf16.msra.mxu0 0
        %1612 = vmatprep.subr.bf16.mxu0 0
        %1613 = vmatpush1.bf16.msra.mxu0 0
        %1614 = vmatprep.subr.bf16.mxu0 0
        %1615 = vmatpush1.bf16.msra.mxu0 0
        %1616 = vmatprep.subr.bf16.mxu0 0
        %1617 = vmatpush1.bf16.msra.mxu0 0
        %1618 = vmatprep.subr.bf16.mxu0 0
        %1619 = vmatpush1.bf16.msra.mxu0 0
        %1620 = vmatprep.subr.bf16.mxu0 0
        %1621 = vmatpush1.bf16.msra.mxu0 0
        %1622 = vmatprep.subr.bf16.mxu0 0
        %1623 = vmatpush1.bf16.msra.mxu0 0
        %1624 = vmatprep.subr.bf16.mxu0 0
        %1625 = vmatpush1.bf16.msra.mxu0 0
        %1626 = vmatprep.subr.bf16.mxu0 0
        %1627 = vmatpush1.bf16.msra.mxu0 0
        %1628 = vmatprep.subr.bf16.mxu0 0
        %1629 = vmatpush1.bf16.msra.mxu0 0
        %1630 = vmatprep.subr.bf16.mxu0 0
        %1631 = vmatpush1.bf16.msra.mxu0 0
        %1632 = vmatprep.mubr.bf16.mxu0 0
        %1633 = vmatmul.mubr.bf16.gmra.mrb[0].mxu0 %v1595
        %v1634 = vpop.f32.mrb[0].mxu0
        %v1635 = vadd.f32 0.0, %v1634
        %v1636 = vpop.f32.mrb[0].mxu0
        %v1637 = vpop.f32.mrb[0].mxu0
        %v1638 = vpop.f32.mrb[0].mxu0
        %1639 = vdwg.mxu0
        %v1641 = vsel %vm1122, %v1542, 0
        %v1644 = vsel %vm1358, %v1546, 0
        %1646 = vmatprep.subr.bf16.mxu0 0
        %1647 = vmatpush1.bf16.msra.mxu0 %v1644
        %1648 = vmatprep.subr.bf16.mxu0 0
        %1649 = vmatpush1.bf16.msra.mxu0 0
        %1650 = vmatprep.subr.bf16.mxu0 0
        %1651 = vmatpush1.bf16.msra.mxu0 0
        %1652 = vmatprep.subr.bf16.mxu0 0
        %1653 = vmatpush1.bf16.msra.mxu0 0
        %1654 = vmatprep.subr.bf16.mxu0 0
        %1655 = vmatpush1.bf16.msra.mxu0 0
        %1656 = vmatprep.subr.bf16.mxu0 0
        %1657 = vmatpush1.bf16.msra.mxu0 0
        %1658 = vmatprep.subr.bf16.mxu0 0
        %1659 = vmatpush1.bf16.msra.mxu0 0
        %1660 = vmatprep.subr.bf16.mxu0 0
        %1661 = vmatpush1.bf16.msra.mxu0 0
        %1662 = vmatprep.subr.bf16.mxu0 0
        %1663 = vmatpush1.bf16.msra.mxu0 0
        %1664 = vmatprep.subr.bf16.mxu0 0
        %1665 = vmatpush1.bf16.msra.mxu0 0
        %1666 = vmatprep.subr.bf16.mxu0 0
        %1667 = vmatpush1.bf16.msra.mxu0 0
        %1668 = vmatprep.subr.bf16.mxu0 0
        %1669 = vmatpush1.bf16.msra.mxu0 0
        %1670 = vmatprep.subr.bf16.mxu0 0
        %1671 = vmatpush1.bf16.msra.mxu0 0
        %1672 = vmatprep.subr.bf16.mxu0 0
        %1673 = vmatpush1.bf16.msra.mxu0 0
        %1674 = vmatprep.subr.bf16.mxu0 0
        %1675 = vmatpush1.bf16.msra.mxu0 0
        %1676 = vmatprep.subr.bf16.mxu0 0
        %1677 = vmatpush1.bf16.msra.mxu0 0
        %1678 = vmatprep.mubr.bf16.mxu0 0
        %1679 = vmatmul.mubr.bf16.gmra.mrb[0].mxu0 %v1641
        %v1680 = vpop.f32.mrb[0].mxu0
        %v1681 = vadd.f32 0.0, %v1680
        %v1682 = vpop.f32.mrb[0].mxu0
        %v1683 = vpop.f32.mrb[0].mxu0
        %v1684 = vpop.f32.mrb[0].mxu0
        %1685 = vdwg.mxu0
        %v1687 = vsel %vm1122, %v1543, 0
        %v1690 = vsel %vm1358, %v1547, 0
        %1692 = vmatprep.subr.bf16.mxu0 0
        %1693 = vmatpush1.bf16.msra.mxu0 %v1690
        %1694 = vmatprep.subr.bf16.mxu0 0
        %1695 = vmatpush1.bf16.msra.mxu0 0
        %1696 = vmatprep.subr.bf16.mxu0 0
        %1697 = vmatpush1.bf16.msra.mxu0 0
        %1698 = vmatprep.subr.bf16.mxu0 0
        %1699 = vmatpush1.bf16.msra.mxu0 0
        %1700 = vmatprep.subr.bf16.mxu0 0
        %1701 = vmatpush1.bf16.msra.mxu0 0
        %1702 = vmatprep.subr.bf16.mxu0 0
        %1703 = vmatpush1.bf16.msra.mxu0 0
        %1704 = vmatprep.subr.bf16.mxu0 0
        %1705 = vmatpush1.bf16.msra.mxu0 0
        %1706 = vmatprep.subr.bf16.mxu0 0
        %1707 = vmatpush1.bf16.msra.mxu0 0
        %1708 = vmatprep.subr.bf16.mxu0 0
        %1709 = vmatpush1.bf16.msra.mxu0 0
        %1710 = vmatprep.subr.bf16.mxu0 0
        %1711 = vmatpush1.bf16.msra.mxu0 0
        %1712 = vmatprep.subr.bf16.mxu0 0
        %1713 = vmatpush1.bf16.msra.mxu0 0
        %1714 = vmatprep.subr.bf16.mxu0 0
        %1715 = vmatpush1.bf16.msra.mxu0 0
        %1716 = vmatprep.subr.bf16.mxu0 0
        %1717 = vmatpush1.bf16.msra.mxu0 0
        %1718 = vmatprep.subr.bf16.mxu0 0
        %1719 = vmatpush1.bf16.msra.mxu0 0
        %1720 = vmatprep.subr.bf16.mxu0 0
        %1721 = vmatpush1.bf16.msra.mxu0 0
        %1722 = vmatprep.subr.bf16.mxu0 0
        %1723 = vmatpush1.bf16.msra.mxu0 0
        %1724 = vmatprep.mubr.bf16.mxu0 0
        %1725 = vmatmul.mubr.bf16.gmra.mrb[0].mxu0 %v1687
        %v1726 = vpop.f32.mrb[0].mxu0
        %v1727 = vadd.f32 0.0, %v1726
        %v1728 = vpop.f32.mrb[0].mxu0
        %v1729 = vpop.f32.mrb[0].mxu0
        %v1730 = vpop.f32.mrb[0].mxu0
        %1731 = vdwg.mxu0
        %v1732 = vsel %vm579, %v1589, 0.0
        %v1733 = vsel %vm579, %v1635, 0.0
        %v1734 = vadd.f32 %v1732, %v1733
        %v1735 = vsel %vm579, %v1681, 0.0
        %v1736 = vadd.f32 %v1734, %v1735
        %v1737 = vsel %vm579, %v1727, 0.0
        %v1738 = vadd.f32 %v1736, %v1737
        %v1739 = vld [vmem:[#allocation11] sm:$0x1]
        %v1741 = vlaneseq
        %v1742 = vshrl.u32 %v1741, 7
        %v1743 = vsub.s32 0, %v1742
        %v1744 = vrot.slane %v1739, %v1743
        %v1746 = vadd.f32 %v1738, %v1744
        %v1747 = vadd.f32 %v576, %v1746
        %v1748 = vld [vmem:[#allocation13] sm:$0x1]
        %v1749 = vld [vmem:[#allocation14] sm:$0x1]
        %v1750 = vsel %vm579, %v1747, 0.0
        %1751 = vadd.xlane.f32.xlu0 %v1750
        %v1752 = vpop.xlane.xlu0 %1751
        %v1753 = vmul.f32 %v1752, %v583
        %v1754 = vsub.f32 %v1747, %v1753
        %v1755 = vmul.f32 %v1754, %v1754
        %v1756 = vsel %vm579, %v1755, 0.0
        %1757 = vadd.xlane.f32.xlu0 %v1756
        %v1758 = vpop.xlane.xlu0 %1757
        %v1759 = vmul.f32 %v1758, %v583
        %v1760 = vadd.f32 %v1759, 1e-05
        %v1761 = vrsqrt.pop %v1760
        %v1762 = vmul.f32 %v1754, %v1761
        %v1764 = vlaneseq
        %v1765 = vshrl.u32 %v1764, 7
        %v1766 = vsub.s32 0, %v1765
        %v1767 = vrot.slane %v1748, %v1766
        %v1769 = vmul.f32 %v1762, %v1767
        %v1771 = vlaneseq
        %v1772 = vshrl.u32 %v1771, 7
        %v1773 = vsub.s32 0, %v1772
        %v1774 = vrot.slane %v1749, %v1773
        %v1776 = vadd.f32 %v1769, %v1774
        %v1777 = vpack.c.bf16 %v1776, %v1776
        %v1778 = vld [vmem:[#allocation16] sm:$0xf]
        %v1779 = vld [vmem:[#allocation16 + $0x4] sm:$0xf]
        %v1780 = vld [vmem:[#allocation16 + $0x8] sm:$0xf]
        %v1781 = vld [vmem:[#allocation16 + $0xc] sm:$0xf]
        %v1782 = vld [vmem:[#allocation17] sm:$0x1]
        %v1784 = vlaneseq
        %v1785 = vshrl.u32 %v1784, 7
        %v1786 = vsub.s32 0, %v1785
        %v1787 = vrot.slane %v1782, %v1786
        %v1793 = vunpack.c.l.b16 %v1778
        %v1794 = vunpack.c.l.b16 %v1779
        %v1795 = vunpack.c.l.b16 %v1780
        %v1796 = vunpack.c.l.b16 %v1781
        %v1797 = vpack.c.b16 %v1794, %v1793
        %v1798 = vpack.c.b16 %v1796, %v1795
        %v1802 = vsel %vm579, %v1777, 0
        %1804 = vmatprep.subr.bf16.mxu0 0
        %1805 = vmatpush1.bf16.msra.mxu0 %v1797
        %1806 = vmatprep.subr.bf16.mxu0 0
        %1807 = vmatpush1.bf16.msra.mxu0 %v1798
        %1808 = vmatprep.subr.bf16.mxu0 0
        %1809 = vmatpush1.bf16.msra.mxu0 0
        %1810 = vmatprep.subr.bf16.mxu0 0
        %1811 = vmatpush1.bf16.msra.mxu0 0
        %1812 = vmatprep.subr.bf16.mxu0 0
        %1813 = vmatpush1.bf16.msra.mxu0 0
        %1814 = vmatprep.subr.bf16.mxu0 0
        %1815 = vmatpush1.bf16.msra.mxu0 0
        %1816 = vmatprep.subr.bf16.mxu0 0
        %1817 = vmatpush1.bf16.msra.mxu0 0
        %1818 = vmatprep.subr.bf16.mxu0 0
        %1819 = vmatpush1.bf16.msra.mxu0 0
        %1820 = vmatprep.subr.bf16.mxu0 0
        %1821 = vmatpush1.bf16.msra.mxu0 0
        %1822 = vmatprep.subr.bf16.mxu0 0
        %1823 = vmatpush1.bf16.msra.mxu0 0
        %1824 = vmatprep.subr.bf16.mxu0 0
        %1825 = vmatpush1.bf16.msra.mxu0 0
        %1826 = vmatprep.subr.bf16.mxu0 0
        %1827 = vmatpush1.bf16.msra.mxu0 0
        %1828 = vmatprep.subr.bf16.mxu0 0
        %1829 = vmatpush1.bf16.msra.mxu0 0
        %1830 = vmatprep.subr.bf16.mxu0 0
        %1831 = vmatpush1.bf16.msra.mxu0 0
        %1832 = vmatprep.subr.bf16.mxu0 0
        %1833 = vmatpush1.bf16.msra.mxu0 0
        %1834 = vmatprep.subr.bf16.mxu0 0
        %1835 = vmatpush1.bf16.msra.mxu0 0
        %1836 = vmatprep.mubr.bf16.mxu0 0
        %1837 = vmatmul.mubr.bf16.gmra.mrb[0].mxu0 %v1802
        %v1838 = vpop.f32.mrb[0].mxu0
        %v1839 = vadd.f32 %v1787, %v1838
        %v1840 = vpop.f32.mrb[0].mxu0
        %v1841 = vpop.f32.mrb[0].mxu0
        %v1842 = vpop.f32.mrb[0].mxu0
        %1843 = vdwg.mxu0
        %v1844 = vmul.f32 %v1839, 0.5
        %v1845 = vmul.f32 %v1839, 0.70710677
        %v1846 = verf.f32.pop %v1845
        %v1847 = vadd.f32 %v1846, 1.0
        %v1848 = vmul.f32 %v1844, %v1847
        %v1849 = vpack.c.bf16 %v1848, %v1848
        %v1850 = vld [vmem:[#allocation19] sm:$0xf]
        %v1851 = vld [vmem:[#allocation19 + $0x4] sm:$0xf]
        %v1852 = vld [vmem:[#allocation19 + $0x8] sm:$0xf]
        %v1853 = vld [vmem:[#allocation19 + $0xc] sm:$0xf]
        %v1854 = vld [vmem:[#allocation19 + $0x10] sm:$0xf]
        %v1855 = vld [vmem:[#allocation19 + $0x14] sm:$0xf]
        %v1856 = vld [vmem:[#allocation19 + $0x18] sm:$0xf]
        %v1857 = vld [vmem:[#allocation19 + $0x1c] sm:$0xf]
        %v1858 = vld [vmem:[#allocation19 + $0x20] sm:$0xf]
        %v1859 = vld [vmem:[#allocation19 + $0x24] sm:$0xf]
        %v1860 = vld [vmem:[#allocation19 + $0x28] sm:$0xf]
        %v1861 = vld [vmem:[#allocation19 + $0x2c] sm:$0xf]
        %v1862 = vld [vmem:[#allocation19 + $0x30] sm:$0xf]
        %v1863 = vld [vmem:[#allocation19 + $0x34] sm:$0xf]
        %v1864 = vld [vmem:[#allocation19 + $0x38] sm:$0xf]
        %v1865 = vld [vmem:[#allocation19 + $0x3c] sm:$0xf]
        %v1866 = vld [vmem:[#allocation20] sm:$0x1]
        %v1868 = vlaneseq
        %v1869 = vshrl.u32 %v1868, 7
        %v1870 = vsub.s32 0, %v1869
        %v1871 = vrot.slane %v1866, %v1870
        %v1889 = vunpack.c.l.b16 %v1850
        %v1890 = vunpack.c.l.b16 %v1851
        %v1891 = vunpack.c.l.b16 %v1852
        %v1892 = vunpack.c.l.b16 %v1853
        %v1893 = vunpack.c.l.b16 %v1854
        %v1894 = vunpack.c.l.b16 %v1855
        %v1895 = vunpack.c.l.b16 %v1856
        %v1896 = vunpack.c.l.b16 %v1857
        %v1897 = vunpack.c.l.b16 %v1858
        %v1898 = vunpack.c.l.b16 %v1859
        %v1899 = vunpack.c.l.b16 %v1860
        %v1900 = vunpack.c.l.b16 %v1861
        %v1901 = vunpack.c.l.b16 %v1862
        %v1902 = vunpack.c.l.b16 %v1863
        %v1903 = vunpack.c.l.b16 %v1864
        %v1904 = vunpack.c.l.b16 %v1865
        %v1905 = vpack.c.b16 %v1890, %v1889
        %v1906 = vpack.c.b16 %v1892, %v1891
        %v1907 = vpack.c.b16 %v1894, %v1893
        %v1908 = vpack.c.b16 %v1896, %v1895
        %v1909 = vpack.c.b16 %v1898, %v1897
        %v1910 = vpack.c.b16 %v1900, %v1899
        %v1911 = vpack.c.b16 %v1902, %v1901
        %v1912 = vpack.c.b16 %v1904, %v1903
        %1921 = vmatprep.subr.bf16.mxu0 0
        %1922 = vmatpush1.bf16.msra.mxu0 %v1905
        %1923 = vmatprep.subr.bf16.mxu0 0
        %1924 = vmatpush1.bf16.msra.mxu0 %v1906
        %1925 = vmatprep.subr.bf16.mxu0 0
        %1926 = vmatpush1.bf16.msra.mxu0 %v1907
        %1927 = vmatprep.subr.bf16.mxu0 0
        %1928 = vmatpush1.bf16.msra.mxu0 %v1908
        %1929 = vmatprep.subr.bf16.mxu0 0
        %1930 = vmatpush1.bf16.msra.mxu0 %v1909
        %1931 = vmatprep.subr.bf16.mxu0 0
        %1932 = vmatpush1.bf16.msra.mxu0 %v1910
        %1933 = vmatprep.subr.bf16.mxu0 0
        %1934 = vmatpush1.bf16.msra.mxu0 %v1911
        %1935 = vmatprep.subr.bf16.mxu0 0
        %1936 = vmatpush1.bf16.msra.mxu0 %v1912
        %1937 = vmatprep.subr.bf16.mxu0 0
        %1938 = vmatpush1.bf16.msra.mxu0 0
        %1939 = vmatprep.subr.bf16.mxu0 0
        %1940 = vmatpush1.bf16.msra.mxu0 0
        %1941 = vmatprep.subr.bf16.mxu0 0
        %1942 = vmatpush1.bf16.msra.mxu0 0
        %1943 = vmatprep.subr.bf16.mxu0 0
        %1944 = vmatpush1.bf16.msra.mxu0 0
        %1945 = vmatprep.subr.bf16.mxu0 0
        %1946 = vmatpush1.bf16.msra.mxu0 0
        %1947 = vmatprep.subr.bf16.mxu0 0
        %1948 = vmatpush1.bf16.msra.mxu0 0
        %1949 = vmatprep.subr.bf16.mxu0 0
        %1950 = vmatpush1.bf16.msra.mxu0 0
        %1951 = vmatprep.subr.bf16.mxu0 0
        %1952 = vmatpush1.bf16.msra.mxu0 0
        %1953 = vmatprep.mubr.bf16.mxu0 0
        %1954 = vmatmul.mubr.bf16.gmra.mrb[0].mxu0 %v1849
        %v1955 = vpop.f32.mrb[0].mxu0
        %v1956 = vadd.f32 %v1871, %v1955
        %v1957 = vpop.f32.mrb[0].mxu0
        %v1958 = vpop.f32.mrb[0].mxu0
        %v1959 = vpop.f32.mrb[0].mxu0
        %1960 = vdwg.mxu0
        %v1961 = vadd.f32 %v1747, %v1956
        %1962 = vst.msk [vmem:[%s574] sm:$0xff] %vm579, %v1961
        %s1963 = sand.u32 %s300, 1
        %s1964 = scalar_lea.sflag [#allocation4], %s1963
        %s1965 = sand.u32 %s300, 1
        %s1966 = smul.addr %s1965, 8
        %s1967 = scalar_lea.vmem [#allocation22], %s1966
        // Predicated region
        $region117: #{tpu_custom_call.1} parent=67 // pred_check
          %p1968 = pneg %p310
        $region118: #{tpu_custom_call.1} parent=67 // pred_check_branch
          %1970 = sbr.rel (%p1968) target = $region120
        $region119: #{tpu_custom_call.1} parent=67 // pred_region
          %s1972 = ssub.s32 128, 128
          %1973 = vsyncadd %s1964, %s1972
          %s1974 = smul.addr %s35, 128
          %s1975 = scalar_lea.hbm %s12, %s1974
          %s1977 = sshll.u32 %s1967, 4
          %s1978 = int_to_ptr.vmem [resolvable:$true] %s1977
          %1980 = dma.vmem_to_hbm [thread:$0]  %s1978, 128, %s1975, %s1964
        $region120: #{tpu_custom_call.1} parent=67 // pred_fallthru
          _
      $region68: #{tpu_custom_call.1} parent=5 // pred_fallthru
        _
      %p1981 = scmp.le.s32.totalorder 2, %s30
      // Predicated region
      $region121: #{tpu_custom_call.1} parent=5 // pred_check
        %p1982 = pneg %p1981
      $region122: #{tpu_custom_call.1} parent=5 // pred_check_branch
        %1984 = sbr.rel (%p1982) target = $region124
      $region123: #{tpu_custom_call.1} parent=5 // pred_region
        %s1985 = ssub.s32 %s30, 2
        // Predicated region
        $region125: #{tpu_custom_call.1} parent=123 // pred_check
          %p1986 = pneg %p316
        $region126: #{tpu_custom_call.1} parent=123 // pred_check_branch
          %1988 = sbr.rel (%p1986) target = $region128
        $region127: #{tpu_custom_call.1} parent=123 // pred_region
          %s1989 = sand.u32 %s301, 1
          %s1990 = scalar_lea.sflag [#allocation4], %s1989
          %s1991 = sand.u32 %s301, 1
          %s1992 = smul.addr %s1991, 8
          %s1993 = scalar_lea.vmem [#allocation22], %s1992
          %1994 = dma.done %s1990, 128
        $region128: #{tpu_custom_call.1} parent=123 // pred_fallthru
          _
      $region124: #{tpu_custom_call.1} parent=5 // pred_fallthru
        _
    $region6: #{tpu_custom_call.1} parent=1 // loop_footer
      %s34 = sadd.s32 1, %s30
    $region7: #{tpu_custom_call.1} parent=1 // loop_footer_branch
      %29 = sbr.rel target = $region3
    $region8: #{tpu_custom_call.1} parent=1 // loop_exit
      _
    %1995 = vsyncpa [#allocation3], 1
    %s1996 = scalar_lea.sflag [#allocation3], 1
    %1997 = vsyncpa %s1996, 1
    %1998 = vsyncpa [#allocation6], 1
    %1999 = vsyncpa [#allocation9], 1
    %2000 = vsyncpa [#allocation12], 1
    %2001 = vsyncpa [#allocation15], 1
    %2002 = vsyncpa [#allocation18], 1
    %2003 = vsyncpa [#allocation21], 1
    %2004 = vsyncpa [#allocation4], 1
    %s2005 = scalar_lea.sflag [#allocation4], 1
    %2006 = vsyncpa %s2005, 1

</llo_original>
